<compile_context>
chip_gen: v5e
topology: v5e:2x2
jax: 0.10.0
libtpu: 0.0.40
codegen_flags: <defaults>
</compile_context>

<pallas_src>
import functools
import math

import jax
import jax.numpy as jnp
from jax.experimental import pallas as pl
from jax.experimental.pallas import tpu as pltpu


# ---------------------------------------------------------------------------
# Hardware-aware configuration
# ---------------------------------------------------------------------------

@functools.lru_cache(maxsize=1)
def _tpu_config():
    """Returns (wide_mxu, vmem_limit_bytes) for the local TPU generation."""
    vmem_cap = 128 * 1024 * 1024          # v5e / v6e default
    try:
        info = pltpu.get_tpu_info()
        cap = getattr(info, "vmem_capacity_bytes", None)
        if cap:
            vmem_cap = int(cap)
    except Exception:                      # noqa: BLE001 - best effort probe
        pass

    kind = ""
    try:
        kind = jax.devices()[0].device_kind.lower()
    except Exception:                      # noqa: BLE001
        pass

    # v6e / v7x have the 256-wide MXU; v5e and older are 128-wide.
    wide_mxu = ("v6" in kind) or ("v7" in kind)
    # v7x only has 64 MiB VMEM per TensorCore.
    if "v7" in kind:
        vmem_cap = min(vmem_cap, 64 * 1024 * 1024)

    vmem_limit = max(32 * 1024 * 1024,
                     min(vmem_cap - 8 * 1024 * 1024, 100 * 1024 * 1024))
    return wide_mxu, int(vmem_limit)


# ---------------------------------------------------------------------------
# Pallas kernels
# ---------------------------------------------------------------------------

def _conv_bias_relu_kernel(x_ref, w_ref, b_ref, o_ref, acc_ref, *,
                           TH, W, KH, KW, Cin, fold_kx, resident):
    """Conv (stride 1, 'same' padding already applied) + bias + ReLU for one
    (cout-tile, batch, row-tile) grid cell.

    x_ref:   (1, Hp, Wp, Cin)    resident padded image   (resident=True), or
             (1, TH, W,  Cin)    streamed row tile        (resident=False)
    w_ref:   (KH, KW*Cin, TCo)   weights, kx folded into the contraction dim
    b_ref:   (1, TCo)            f32 bias tile
    o_ref:   (1, TH, W, TCo)     bf16 output row tile
    acc_ref: (TH*W, TCo)         f32 VMEM accumulator (scratch)
    """
    t = pl.program_id(2)                       # row-tile axis is innermost in
    r0 = t * TH if resident else 0             # both grid orders used below
    M = TH * W
    tco = o_ref.shape[-1]

    first = [True]

    def accum(val):
        if first[0]:
            acc_ref[...] = val
            first[0] = False
        else:
            acc_ref[...] += val

    for ky in range(KH):
        if KW == 1:
            # Pre-im2col'd input (first conv): one matmul, K = 9*Cin_orig.
            patch = x_ref[0, pl.ds(r0 + ky, TH), :, :]
            accum(jnp.dot(patch.reshape(M, Cin), w_ref[ky],
                          preferred_element_type=jnp.float32))
        elif fold_kx:
            # Fold the 3 kx taps into one K=3*Cin matmul (fills the 256-deep MXU
            # on v6e/v7x when Cin == 128).
            patch = jnp.concatenate(
                [x_ref[0, pl.ds(r0 + ky, TH), pl.ds(kx, W), :] for kx in range(KW)],
                axis=-1)
            accum(jnp.dot(patch.reshape(M, KW * Cin), w_ref[ky],
                          preferred_element_type=jnp.float32))
        else:
            # Per-tap dots: K = Cin already fills the MXU depth (or the fold
            # would only add VMEM copy traffic, e.g. on v5e).
            for kx in range(KW):
                patch = x_ref[0, pl.ds(r0 + ky, TH), pl.ds(kx, W), :]
                accum(jnp.dot(patch.reshape(M, Cin),
                              w_ref[ky, pl.ds(kx * Cin, Cin), :],
                              preferred_element_type=jnp.float32))

    out = jnp.maximum(acc_ref[...] + b_ref[...], 0.0)      # bias broadcasts rows
    o_ref[...] = out.reshape(1, TH, W, tco).astype(o_ref.dtype)


def _maxpool2x2_kernel(x_ref, o_ref, *, C):
    """Single-pass 2x2/2 max pool over TR output rows.

    x_ref: (1, TR, 2, Wo, 2*C)  row pairs; adjacent columns paired along lanes
                                by a wrapper-side (free, contiguous) reshape.
    o_ref: (1, TR, Wo, C)
    """
    x = x_ref[...]                                     # (1, TR, 2, Wo, 2C)
    m = jnp.maximum(x[0, :, 0], x[0, :, 1])            # reduce over the row pair
    o_ref[0] = jnp.maximum(m[..., :C], m[..., C:])     # reduce over the col pair


# ---------------------------------------------------------------------------
# Wrappers (pallas_call plumbing)
# ---------------------------------------------------------------------------

def _pick_row_tile(H, W, target_elems=1024):
    """Largest divisor TH of H with TH*W <= target (keeps the f32 accumulator in
    a ~<=1 MB VMEM scratch while giving the MXU several full passes per step)."""
    cap = max(1, target_elems // W)
    th = 1
    for d in range(1, H + 1):
        if H % d == 0 and d <= cap:
            th = d
    return th


def conv3x3_relu(x, w, b, *, wide_mxu, vmem_limit):
    """x: (N,H,W,Cin) bf16; w: (3,3,Cin,Cout) f32; b: (Cout,) f32 -> (N,H,W,Cout) bf16."""
    N, H, W, Cin = x.shape
    Cout = w.shape[-1]

    if Cin <= 8:
        # First conv: full im2col at the wrapper -> single K=9*Cin matmul per tile.
        # Streamed per row tile (NOT resident): a 27-wide last dim pads to 128
        # lanes in VMEM, so keeping the whole slab resident would waste ~4.7x.
        xp = jnp.pad(x, ((0, 0), (1, 1), (1, 1), (0, 0)))
        xin = jnp.concatenate(
            [xp[:, ky:ky + H, kx:kx + W, :] for ky in range(3) for kx in range(3)],
            axis=-1)                                       # (N, H, W, 9*Cin)
        wmat = w.reshape(1, 9 * Cin, Cout)
        KH, KW, Cin_k = 1, 1, 9 * Cin
        resident = False
    else:
        # TODO(synk): in-kernel halo DMA would remove this padded HBM round trip.
        xin = jnp.pad(x, ((0, 0), (1, 1), (1, 1), (0, 0)))  # (N, H+2, W+2, Cin)
        wmat = w.reshape(3, 3 * Cin, Cout)
        KH, KW, Cin_k = 3, 3, Cin
        resident = True

    xin = xin.astype(jnp.bfloat16)
    wmat = wmat.astype(jnp.bfloat16)
    b2 = b.reshape(1, Cout).astype(jnp.float32)

    Hp, Wp = xin.shape[1], xin.shape[2]

    # Output-channel tile: 256 on the 256-wide MXU (v6e/v7x), 128 on v5e/older.
    TCo = min(Cout, 256 if wide_mxu else 128)
    n_co = Cout // TCo

    TH = _pick_row_tile(H, W, target_elems=1024)
    n_rt = H // TH

    # kx-fold only where it raises effective MXU depth (Cin=128 on wide MXU).
    # TODO(synk): a wrapper-side kx-only im2col could also lift the Cin=64 layer.
    fold_kx = (KH == 3) and wide_mxu and (Cin == 128) and (W % 8 == 0)

    x_block = (1, Hp, Wp, Cin_k) if resident else (1, TH, W, Cin_k)
    w_block = (KH, KW * Cin_k, TCo)
    x_bytes = math.prod(x_block) * 2
    w_bytes = math.prod(w_block) * 2
    # Late layers: weights dwarf the image -> make weights the resident tensor.
    weight_major = resident and (w_bytes > x_bytes)

    if weight_major:
        grid = (n_co, N, n_rt)
        x_map = lambda c, n, t: (n, 0, 0, 0)
        w_map = lambda c, n, t: (0, 0, c)
        b_map = lambda c, n, t: (0, c)
        o_map = lambda c, n, t: (n, t, 0, c)
    else:
        grid = (N, n_co, n_rt)
        if resident:
            x_map = lambda n, c, t: (n, 0, 0, 0)
        else:
            x_map = lambda n, c, t: (n, t, 0, 0)
        w_map = lambda n, c, t: (0, 0, c)
        b_map = lambda n, c, t: (0, c)
        o_map = lambda n, c, t: (n, t, 0, c)

    kernel = functools.partial(
        _conv_bias_relu_kernel, TH=TH, W=W, KH=KH, KW=KW, Cin=Cin_k,
        fold_kx=fold_kx, resident=resident)

    return pl.pallas_call(
        kernel,
        out_shape=jax.ShapeDtypeStruct((N, H, W, Cout), jnp.bfloat16),
        grid_spec=pltpu.PrefetchScalarGridSpec(
            num_scalar_prefetch=0,
            grid=grid,
            in_specs=[
                pl.BlockSpec(x_block, x_map),
                pl.BlockSpec(w_block, w_map),
                pl.BlockSpec((1, TCo), b_map),
            ],
            out_specs=pl.BlockSpec((1, TH, W, TCo), o_map),
            scratch_shapes=[pltpu.VMEM((TH * W, TCo), jnp.float32)],
        ),
        compiler_params=pltpu.CompilerParams(
            dimension_semantics=("parallel", "parallel", "parallel"),
            vmem_limit_bytes=vmem_limit,
        ),
    )(xin, wmat, b2)


def maxpool2x2(x, *, vmem_limit):
    """2x2 max pool, stride 2. x: (N, H, W, C) with even H, W."""
    N, H, W, C = x.shape
    Ho, Wo = H // 2, W // 2
    # Free contiguous reshape: pairs the two input rows and adjacent columns so
    # the kernel needs no strided accesses and reads x exactly once.
    xr = x.reshape(N, Ho, 2, Wo, 2 * C)

    itemsize = jnp.dtype(x.dtype).itemsize
    TR = 1                                   # output rows per grid step
    for d in range(1, Ho + 1):
        if Ho % d == 0 and d * 2 * Wo * 2 * C * itemsize <= 4 * 1024 * 1024:
            TR = d

    kernel = functools.partial(_maxpool2x2_kernel, C=C)
    return pl.pallas_call(
        kernel,
        out_shape=jax.ShapeDtypeStruct((N, Ho, Wo, C), x.dtype),
        grid_spec=pltpu.PrefetchScalarGridSpec(
            num_scalar_prefetch=0,
            grid=(N, Ho // TR),
            in_specs=[pl.BlockSpec((1, TR, 2, Wo, 2 * C),
                                   lambda n, i: (n, i, 0, 0, 0))],
            out_specs=pl.BlockSpec((1, TR, Wo, C), lambda n, i: (n, i, 0, 0)),
        ),
        compiler_params=pltpu.CompilerParams(
            dimension_semantics=("parallel", "parallel"),
            vmem_limit_bytes=vmem_limit,
        ),
    )(xr)


# ---------------------------------------------------------------------------
# VGG19 feature extractor (slices 1..5, i.e. features[0:30])
# ---------------------------------------------------------------------------

# (Cin, Cout) of the 13 conv layers covered by slice1..slice5.
CONV_CHANNELS = [
    (3, 64),                                            # slice1
    (64, 64), (64, 128),                                # slice2
    (128, 128), (128, 256),                             # slice3
    (256, 256), (256, 256), (256, 256), (256, 512),     # slice4
    (512, 512), (512, 512), (512, 512), (512, 512),     # slice5
]

# Op program: 'C' = conv+relu, 'P' = maxpool, 'O' = emit slice output.
_OPS = ['C', 'O',                               # slice1 -> h_relu1
        'C', 'P', 'C', 'O',                     # slice2 -> h_relu2
        'C', 'P', 'C', 'O',                     # slice3 -> h_relu3
        'C', 'C', 'C', 'P', 'C', 'O',           # slice4 -> h_relu4
        'C', 'C', 'C', 'P', 'C', 'O']           # slice5 -> h_relu5


def init_vgg19_params(key):
    params = []
    for i, (cin, cout) in enumerate(CONV_CHANNELS):
        kw = jax.random.fold_in(key, 2 * i)
        kb = jax.random.fold_in(key, 2 * i + 1)
        std = math.sqrt(2.0 / (cin * 9))
        w = std * jax.random.normal(kw, (3, 3, cin, cout), dtype=jnp.float32)
        b = 0.01 * jax.random.normal(kb, (cout,), dtype=jnp.float32)
        params.append((w, b))
    return params


def vgg19_forward(x_nchw, params):
    """Returns [h_relu1, ..., h_relu5], each NCHW f32 like the PyTorch module."""
    wide_mxu, vmem_limit = _tpu_config()
    x = jnp.transpose(x_nchw.astype(jnp.float32), (0, 2, 3, 1))  # NCHW -> NHWC
    x = x.astype(jnp.bfloat16)
    outs = []
    ci = 0
    for op in _OPS:
        if op == 'C':
            w, b = params[ci]
            x = conv3x3_relu(x, w, b, wide_mxu=wide_mxu, vmem_limit=vmem_limit)
            ci += 1
        elif op == 'P':
            x = maxpool2x2(x, vmem_limit=vmem_limit)
        else:  # 'O'
            outs.append(jnp.transpose(x.astype(jnp.float32), (0, 3, 1, 2)))
    return outs


# ---------------------------------------------------------------------------
# Numeric self-test against a pure-JAX f32 reference
# ---------------------------------------------------------------------------

def _self_test():
    wide_mxu, vmem_limit = _tpu_config()
    k = jax.random.PRNGKey(42)

    # conv: 128 -> 256 channels at 8x8 (exercises the wide-channel matmul path).
    x = jax.random.normal(jax.random.fold_in(k, 0), (1, 8, 8, 128),
                          dtype=jnp.float32).astype(jnp.bfloat16)
    w = 0.05 * jax.random.normal(jax.random.fold_in(k, 1), (3, 3, 128, 256),
                                 dtype=jnp.float32)
    b = 0.1 * jax.random.normal(jax.random.fold_in(k, 2), (256,),
                                dtype=jnp.float32)
    got = conv3x3_relu(x, w, b, wide_mxu=wide_mxu,
                       vmem_limit=vmem_limit).astype(jnp.float32)
    ref = jax.lax.conv_general_dilated(
        x.astype(jnp.float32), w.astype(jnp.bfloat16).astype(jnp.float32),
        window_strides=(1, 1), padding="SAME",
        dimension_numbers=("NHWC", "HWIO", "NHWC")) + b
    ref = jnp.maximum(ref, 0.0)
    err = float(jnp.max(jnp.abs(got - ref) / (1.0 + jnp.abs(ref))))
    assert err < 2e-2, f"conv mismatch, normalized err={err}"

    # maxpool
    p = jax.random.normal(jax.random.fold_in(k, 3), (1, 8, 8, 64),
                          dtype=jnp.float32).astype(jnp.bfloat16)
    got_p = maxpool2x2(p, vmem_limit=vmem_limit).astype(jnp.float32)
    ref_p = jnp.max(p.astype(jnp.float32).reshape(1, 4, 2, 4, 2, 64), axis=(2, 4))
    assert bool(jnp.allclose(got_p, ref_p, rtol=1e-5, atol=1e-5)), "pool mismatch"


# ---------------------------------------------------------------------------
# Demo
# ---------------------------------------------------------------------------

if __name__ == "__main__":
    _self_test()

    key = jax.random.PRNGKey(0)
    params = init_vgg19_params(jax.random.fold_in(key, 1))

    # Small input consistent with the module: NCHW, 3 input channels.
    x = jax.random.normal(jax.random.fold_in(key, 2), (2, 3, 32, 32),
                          dtype=jnp.float32)

    fwd = jax.jit(lambda inp: vgg19_forward(inp, params))
    outs = fwd(x)
    outs = jax.block_until_ready(outs)

    expected = [(2, 64, 32, 32), (2, 128, 16, 16), (2, 256, 8, 8),
                (2, 512, 4, 4), (2, 512, 2, 2)]
    assert [tuple(o.shape) for o in outs] == expected, \
        [tuple(o.shape) for o in outs]
    assert all(bool(jnp.all(jnp.isfinite(o))) for o in outs)
    print("KERNEL_OK")
</pallas_src>

<mosaic_0001>
module attributes {stable_mosaic.version = 11 : i64} {
  func.func @_conv_bias_relu_kernel(%arg0: i32, %arg1: i32, %arg2: i32, %arg3: memref<1x10x10x128xbf16, #tpu.memory_space<vmem>>, %arg4: memref<3x384x128xbf16, #tpu.memory_space<vmem>>, %arg5: memref<1x128xf32, #tpu.memory_space<vmem>>, %arg6: memref<1x8x8x128xbf16, #tpu.memory_space<vmem>>, %arg7: memref<64x128xf32, #tpu.memory_space<vmem>>) attributes {dimension_semantics = [#tpu.dimension_semantics<parallel>, #tpu.dimension_semantics<parallel>, #tpu.dimension_semantics<parallel>], iteration_bounds = array<i64: 2, 1, 1>, scalar_prefetch = 0 : i64, scratch_operands = 1 : i64, tpu.core_type = #tpu.core_type<tc>, window_params = [{transform_indices = @transform_0, window_bounds = array<i64: 1, 10, 10, 128>}, {transform_indices = @transform_1, window_bounds = array<i64: 3, 384, 128>}, {transform_indices = @transform_2, window_bounds = array<i64: 1, 128>}, {transform_indices = @transform_3, window_bounds = array<i64: 1, 8, 8, 128>}]} {
    %c8_i32 = arith.constant 8 : i32
    %0 = arith.muli %arg2, %c8_i32 : i32
    %c0_i32 = arith.constant 0 : i32
    %1 = arith.addi %0, %c0_i32 : i32
    %c0 = arith.constant 0 : index
    %2 = arith.index_cast %1 : i32 to index
    %c0_0 = arith.constant 0 : index
    %c0_1 = arith.constant 0 : index
    %3 = vector.load %arg3[%c0, %2, %c0_0, %c0_1] : memref<1x10x10x128xbf16, #tpu.memory_space<vmem>>, vector<1x8x8x128xbf16>
    %4 = vector.shape_cast %3 : vector<1x8x8x128xbf16> to vector<8x8x128xbf16>
    %5 = vector.shape_cast %4 : vector<8x8x128xbf16> to vector<64x128xbf16>
    %c0_2 = arith.constant 0 : index
    %c0_3 = arith.constant 0 : index
    %c0_4 = arith.constant 0 : index
    %6 = vector.load %arg4[%c0_2, %c0_3, %c0_4] : memref<3x384x128xbf16, #tpu.memory_space<vmem>>, vector<1x128x128xbf16>
    %7 = vector.shape_cast %6 : vector<1x128x128xbf16> to vector<128x128xbf16>
    %cst = arith.constant dense<0.000000e+00> : vector<64x128xf32>
    %8 = tpu.matmul %5, %7, %cst {dimension_numbers = #tpu.dot_dimension_numbers<[1], [0], [0], [1], [0, 0, 1, 1], [], []>} : vector<64x128xbf16>, vector<128x128xbf16>, vector<64x128xf32> -> vector<64x128xf32>
    %c0_5 = arith.constant 0 : index
    %c0_6 = arith.constant 0 : index
    %9 = vector.load %arg7[%c0_5, %c0_6] : memref<64x128xf32, #tpu.memory_space<vmem>>, vector<64x128xf32>
    tpu.vector_store %arg7[%c0_5, %c0_6], %8 {strides = array<i32>} : memref<64x128xf32, #tpu.memory_space<vmem>>, vector<64x128xf32>,
    %c0_i32_7 = arith.constant 0 : i32
    %10 = arith.addi %0, %c0_i32_7 : i32
    %c0_8 = arith.constant 0 : index
    %11 = arith.index_cast %10 : i32 to index
    %c1 = arith.constant 1 : index
    %c0_9 = arith.constant 0 : index
    %12 = vector.load %arg3[%c0_8, %11, %c1, %c0_9] : memref<1x10x10x128xbf16, #tpu.memory_space<vmem>>, vector<1x8x8x128xbf16>
    %13 = vector.shape_cast %12 : vector<1x8x8x128xbf16> to vector<8x8x128xbf16>
    %14 = vector.shape_cast %13 : vector<8x8x128xbf16> to vector<64x128xbf16>
    %c0_10 = arith.constant 0 : index
    %c128 = arith.constant 128 : index
    %c0_11 = arith.constant 0 : index
    %15 = vector.load %arg4[%c0_10, %c128, %c0_11] : memref<3x384x128xbf16, #tpu.memory_space<vmem>>, vector<1x128x128xbf16>
    %16 = vector.shape_cast %15 : vector<1x128x128xbf16> to vector<128x128xbf16>
    %cst_12 = arith.constant dense<0.000000e+00> : vector<64x128xf32>
    %17 = tpu.matmul %14, %16, %cst_12 {dimension_numbers = #tpu.dot_dimension_numbers<[1], [0], [0], [1], [0, 0, 1, 1], [], []>} : vector<64x128xbf16>, vector<128x128xbf16>, vector<64x128xf32> -> vector<64x128xf32>
    %c0_13 = arith.constant 0 : index
    %c0_14 = arith.constant 0 : index
    %18 = vector.load %arg7[%c0_13, %c0_14] : memref<64x128xf32, #tpu.memory_space<vmem>>, vector<64x128xf32>
    %19 = arith.addf %18, %17 : vector<64x128xf32>
    %c0_15 = arith.constant 0 : index
    %c0_16 = arith.constant 0 : index
    %20 = vector.load %arg7[%c0_15, %c0_16] : memref<64x128xf32, #tpu.memory_space<vmem>>, vector<64x128xf32>
    tpu.vector_store %arg7[%c0_15, %c0_16], %19 {strides = array<i32>} : memref<64x128xf32, #tpu.memory_space<vmem>>, vector<64x128xf32>,
    %c0_i32_17 = arith.constant 0 : i32
    %21 = arith.addi %0, %c0_i32_17 : i32
    %c0_18 = arith.constant 0 : index
    %22 = arith.index_cast %21 : i32 to index
    %c2 = arith.constant 2 : index
    %c0_19 = arith.constant 0 : index
    %23 = vector.load %arg3[%c0_18, %22, %c2, %c0_19] : memref<1x10x10x128xbf16, #tpu.memory_space<vmem>>, vector<1x8x8x128xbf16>
    %24 = vector.shape_cast %23 : vector<1x8x8x128xbf16> to vector<8x8x128xbf16>
    %25 = vector.shape_cast %24 : vector<8x8x128xbf16> to vector<64x128xbf16>
    %c0_20 = arith.constant 0 : index
    %c256 = arith.constant 256 : index
    %c0_21 = arith.constant 0 : index
    %26 = vector.load %arg4[%c0_20, %c256, %c0_21] : memref<3x384x128xbf16, #tpu.memory_space<vmem>>, vector<1x128x128xbf16>
    %27 = vector.shape_cast %26 : vector<1x128x128xbf16> to vector<128x128xbf16>
    %cst_22 = arith.constant dense<0.000000e+00> : vector<64x128xf32>
    %28 = tpu.matmul %25, %27, %cst_22 {dimension_numbers = #tpu.dot_dimension_numbers<[1], [0], [0], [1], [0, 0, 1, 1], [], []>} : vector<64x128xbf16>, vector<128x128xbf16>, vector<64x128xf32> -> vector<64x128xf32>
    %c0_23 = arith.constant 0 : index
    %c0_24 = arith.constant 0 : index
    %29 = vector.load %arg7[%c0_23, %c0_24] : memref<64x128xf32, #tpu.memory_space<vmem>>, vector<64x128xf32>
    %30 = arith.addf %29, %28 : vector<64x128xf32>
    %c0_25 = arith.constant 0 : index
    %c0_26 = arith.constant 0 : index
    %31 = vector.load %arg7[%c0_25, %c0_26] : memref<64x128xf32, #tpu.memory_space<vmem>>, vector<64x128xf32>
    tpu.vector_store %arg7[%c0_25, %c0_26], %30 {strides = array<i32>} : memref<64x128xf32, #tpu.memory_space<vmem>>, vector<64x128xf32>,
    %c1_i32 = arith.constant 1 : i32
    %32 = arith.addi %0, %c1_i32 : i32
    %c0_27 = arith.constant 0 : index
    %33 = arith.index_cast %32 : i32 to index
    %c0_28 = arith.constant 0 : index
    %c0_29 = arith.constant 0 : index
    %34 = vector.load %arg3[%c0_27, %33, %c0_28, %c0_29] : memref<1x10x10x128xbf16, #tpu.memory_space<vmem>>, vector<1x8x8x128xbf16>
    %35 = vector.shape_cast %34 : vector<1x8x8x128xbf16> to vector<8x8x128xbf16>
    %36 = vector.shape_cast %35 : vector<8x8x128xbf16> to vector<64x128xbf16>
    %c1_30 = arith.constant 1 : index
    %c0_31 = arith.constant 0 : index
    %c0_32 = arith.constant 0 : index
    %37 = vector.load %arg4[%c1_30, %c0_31, %c0_32] : memref<3x384x128xbf16, #tpu.memory_space<vmem>>, vector<1x128x128xbf16>
    %38 = vector.shape_cast %37 : vector<1x128x128xbf16> to vector<128x128xbf16>
    %cst_33 = arith.constant dense<0.000000e+00> : vector<64x128xf32>
    %39 = tpu.matmul %36, %38, %cst_33 {dimension_numbers = #tpu.dot_dimension_numbers<[1], [0], [0], [1], [0, 0, 1, 1], [], []>} : vector<64x128xbf16>, vector<128x128xbf16>, vector<64x128xf32> -> vector<64x128xf32>
    %c0_34 = arith.constant 0 : index
    %c0_35 = arith.constant 0 : index
    %40 = vector.load %arg7[%c0_34, %c0_35] : memref<64x128xf32, #tpu.memory_space<vmem>>, vector<64x128xf32>
    %41 = arith.addf %40, %39 : vector<64x128xf32>
    %c0_36 = arith.constant 0 : index
    %c0_37 = arith.constant 0 : index
    %42 = vector.load %arg7[%c0_36, %c0_37] : memref<64x128xf32, #tpu.memory_space<vmem>>, vector<64x128xf32>
    tpu.vector_store %arg7[%c0_36, %c0_37], %41 {strides = array<i32>} : memref<64x128xf32, #tpu.memory_space<vmem>>, vector<64x128xf32>,
    %c1_i32_38 = arith.constant 1 : i32
    %43 = arith.addi %0, %c1_i32_38 : i32
    %c0_39 = arith.constant 0 : index
    %44 = arith.index_cast %43 : i32 to index
    %c1_40 = arith.constant 1 : index
    %c0_41 = arith.constant 0 : index
    %45 = vector.load %arg3[%c0_39, %44, %c1_40, %c0_41] : memref<1x10x10x128xbf16, #tpu.memory_space<vmem>>, vector<1x8x8x128xbf16>
    %46 = vector.shape_cast %45 : vector<1x8x8x128xbf16> to vector<8x8x128xbf16>
    %47 = vector.shape_cast %46 : vector<8x8x128xbf16> to vector<64x128xbf16>
    %c1_42 = arith.constant 1 : index
    %c128_43 = arith.constant 128 : index
    %c0_44 = arith.constant 0 : index
    %48 = vector.load %arg4[%c1_42, %c128_43, %c0_44] : memref<3x384x128xbf16, #tpu.memory_space<vmem>>, vector<1x128x128xbf16>
    %49 = vector.shape_cast %48 : vector<1x128x128xbf16> to vector<128x128xbf16>
    %cst_45 = arith.constant dense<0.000000e+00> : vector<64x128xf32>
    %50 = tpu.matmul %47, %49, %cst_45 {dimension_numbers = #tpu.dot_dimension_numbers<[1], [0], [0], [1], [0, 0, 1, 1], [], []>} : vector<64x128xbf16>, vector<128x128xbf16>, vector<64x128xf32> -> vector<64x128xf32>
    %c0_46 = arith.constant 0 : index
    %c0_47 = arith.constant 0 : index
    %51 = vector.load %arg7[%c0_46, %c0_47] : memref<64x128xf32, #tpu.memory_space<vmem>>, vector<64x128xf32>
    %52 = arith.addf %51, %50 : vector<64x128xf32>
    %c0_48 = arith.constant 0 : index
    %c0_49 = arith.constant 0 : index
    %53 = vector.load %arg7[%c0_48, %c0_49] : memref<64x128xf32, #tpu.memory_space<vmem>>, vector<64x128xf32>
    tpu.vector_store %arg7[%c0_48, %c0_49], %52 {strides = array<i32>} : memref<64x128xf32, #tpu.memory_space<vmem>>, vector<64x128xf32>,
    %c1_i32_50 = arith.constant 1 : i32
    %54 = arith.addi %0, %c1_i32_50 : i32
    %c0_51 = arith.constant 0 : index
    %55 = arith.index_cast %54 : i32 to index
    %c2_52 = arith.constant 2 : index
    %c0_53 = arith.constant 0 : index
    %56 = vector.load %arg3[%c0_51, %55, %c2_52, %c0_53] : memref<1x10x10x128xbf16, #tpu.memory_space<vmem>>, vector<1x8x8x128xbf16>
    %57 = vector.shape_cast %56 : vector<1x8x8x128xbf16> to vector<8x8x128xbf16>
    %58 = vector.shape_cast %57 : vector<8x8x128xbf16> to vector<64x128xbf16>
    %c1_54 = arith.constant 1 : index
    %c256_55 = arith.constant 256 : index
    %c0_56 = arith.constant 0 : index
    %59 = vector.load %arg4[%c1_54, %c256_55, %c0_56] : memref<3x384x128xbf16, #tpu.memory_space<vmem>>, vector<1x128x128xbf16>
    %60 = vector.shape_cast %59 : vector<1x128x128xbf16> to vector<128x128xbf16>
    %cst_57 = arith.constant dense<0.000000e+00> : vector<64x128xf32>
    %61 = tpu.matmul %58, %60, %cst_57 {dimension_numbers = #tpu.dot_dimension_numbers<[1], [0], [0], [1], [0, 0, 1, 1], [], []>} : vector<64x128xbf16>, vector<128x128xbf16>, vector<64x128xf32> -> vector<64x128xf32>
    %c0_58 = arith.constant 0 : index
    %c0_59 = arith.constant 0 : index
    %62 = vector.load %arg7[%c0_58, %c0_59] : memref<64x128xf32, #tpu.memory_space<vmem>>, vector<64x128xf32>
    %63 = arith.addf %62, %61 : vector<64x128xf32>
    %c0_60 = arith.constant 0 : index
    %c0_61 = arith.constant 0 : index
    %64 = vector.load %arg7[%c0_60, %c0_61] : memref<64x128xf32, #tpu.memory_space<vmem>>, vector<64x128xf32>
    tpu.vector_store %arg7[%c0_60, %c0_61], %63 {strides = array<i32>} : memref<64x128xf32, #tpu.memory_space<vmem>>, vector<64x128xf32>,
    %c2_i32 = arith.constant 2 : i32
    %65 = arith.addi %0, %c2_i32 : i32
    %c0_62 = arith.constant 0 : index
    %66 = arith.index_cast %65 : i32 to index
    %c0_63 = arith.constant 0 : index
    %c0_64 = arith.constant 0 : index
    %67 = vector.load %arg3[%c0_62, %66, %c0_63, %c0_64] : memref<1x10x10x128xbf16, #tpu.memory_space<vmem>>, vector<1x8x8x128xbf16>
    %68 = vector.shape_cast %67 : vector<1x8x8x128xbf16> to vector<8x8x128xbf16>
    %69 = vector.shape_cast %68 : vector<8x8x128xbf16> to vector<64x128xbf16>
    %c2_65 = arith.constant 2 : index
    %c0_66 = arith.constant 0 : index
    %c0_67 = arith.constant 0 : index
    %70 = vector.load %arg4[%c2_65, %c0_66, %c0_67] : memref<3x384x128xbf16, #tpu.memory_space<vmem>>, vector<1x128x128xbf16>
    %71 = vector.shape_cast %70 : vector<1x128x128xbf16> to vector<128x128xbf16>
    %cst_68 = arith.constant dense<0.000000e+00> : vector<64x128xf32>
    %72 = tpu.matmul %69, %71, %cst_68 {dimension_numbers = #tpu.dot_dimension_numbers<[1], [0], [0], [1], [0, 0, 1, 1], [], []>} : vector<64x128xbf16>, vector<128x128xbf16>, vector<64x128xf32> -> vector<64x128xf32>
    %c0_69 = arith.constant 0 : index
    %c0_70 = arith.constant 0 : index
    %73 = vector.load %arg7[%c0_69, %c0_70] : memref<64x128xf32, #tpu.memory_space<vmem>>, vector<64x128xf32>
    %74 = arith.addf %73, %72 : vector<64x128xf32>
    %c0_71 = arith.constant 0 : index
    %c0_72 = arith.constant 0 : index
    %75 = vector.load %arg7[%c0_71, %c0_72] : memref<64x128xf32, #tpu.memory_space<vmem>>, vector<64x128xf32>
    tpu.vector_store %arg7[%c0_71, %c0_72], %74 {strides = array<i32>} : memref<64x128xf32, #tpu.memory_space<vmem>>, vector<64x128xf32>,
    %c2_i32_73 = arith.constant 2 : i32
    %76 = arith.addi %0, %c2_i32_73 : i32
    %c0_74 = arith.constant 0 : index
    %77 = arith.index_cast %76 : i32 to index
    %c1_75 = arith.constant 1 : index
    %c0_76 = arith.constant 0 : index
    %78 = vector.load %arg3[%c0_74, %77, %c1_75, %c0_76] : memref<1x10x10x128xbf16, #tpu.memory_space<vmem>>, vector<1x8x8x128xbf16>
    %79 = vector.shape_cast %78 : vector<1x8x8x128xbf16> to vector<8x8x128xbf16>
    %80 = vector.shape_cast %79 : vector<8x8x128xbf16> to vector<64x128xbf16>
    %c2_77 = arith.constant 2 : index
    %c128_78 = arith.constant 128 : index
    %c0_79 = arith.constant 0 : index
    %81 = vector.load %arg4[%c2_77, %c128_78, %c0_79] : memref<3x384x128xbf16, #tpu.memory_space<vmem>>, vector<1x128x128xbf16>
    %82 = vector.shape_cast %81 : vector<1x128x128xbf16> to vector<128x128xbf16>
    %cst_80 = arith.constant dense<0.000000e+00> : vector<64x128xf32>
    %83 = tpu.matmul %80, %82, %cst_80 {dimension_numbers = #tpu.dot_dimension_numbers<[1], [0], [0], [1], [0, 0, 1, 1], [], []>} : vector<64x128xbf16>, vector<128x128xbf16>, vector<64x128xf32> -> vector<64x128xf32>
    %c0_81 = arith.constant 0 : index
    %c0_82 = arith.constant 0 : index
    %84 = vector.load %arg7[%c0_81, %c0_82] : memref<64x128xf32, #tpu.memory_space<vmem>>, vector<64x128xf32>
    %85 = arith.addf %84, %83 : vector<64x128xf32>
    %c0_83 = arith.constant 0 : index
    %c0_84 = arith.constant 0 : index
    %86 = vector.load %arg7[%c0_83, %c0_84] : memref<64x128xf32, #tpu.memory_space<vmem>>, vector<64x128xf32>
    tpu.vector_store %arg7[%c0_83, %c0_84], %85 {strides = array<i32>} : memref<64x128xf32, #tpu.memory_space<vmem>>, vector<64x128xf32>,
    %c2_i32_85 = arith.constant 2 : i32
    %87 = arith.addi %0, %c2_i32_85 : i32
    %c0_86 = arith.constant 0 : index
    %88 = arith.index_cast %87 : i32 to index
    %c2_87 = arith.constant 2 : index
    %c0_88 = arith.constant 0 : index
    %89 = vector.load %arg3[%c0_86, %88, %c2_87, %c0_88] : memref<1x10x10x128xbf16, #tpu.memory_space<vmem>>, vector<1x8x8x128xbf16>
    %90 = vector.shape_cast %89 : vector<1x8x8x128xbf16> to vector<8x8x128xbf16>
    %91 = vector.shape_cast %90 : vector<8x8x128xbf16> to vector<64x128xbf16>
    %c2_89 = arith.constant 2 : index
    %c256_90 = arith.constant 256 : index
    %c0_91 = arith.constant 0 : index
    %92 = vector.load %arg4[%c2_89, %c256_90, %c0_91] : memref<3x384x128xbf16, #tpu.memory_space<vmem>>, vector<1x128x128xbf16>
    %93 = vector.shape_cast %92 : vector<1x128x128xbf16> to vector<128x128xbf16>
    %cst_92 = arith.constant dense<0.000000e+00> : vector<64x128xf32>
    %94 = tpu.matmul %91, %93, %cst_92 {dimension_numbers = #tpu.dot_dimension_numbers<[1], [0], [0], [1], [0, 0, 1, 1], [], []>} : vector<64x128xbf16>, vector<128x128xbf16>, vector<64x128xf32> -> vector<64x128xf32>
    %c0_93 = arith.constant 0 : index
    %c0_94 = arith.constant 0 : index
    %95 = vector.load %arg7[%c0_93, %c0_94] : memref<64x128xf32, #tpu.memory_space<vmem>>, vector<64x128xf32>
    %96 = arith.addf %95, %94 : vector<64x128xf32>
    %c0_95 = arith.constant 0 : index
    %c0_96 = arith.constant 0 : index
    %97 = vector.load %arg7[%c0_95, %c0_96] : memref<64x128xf32, #tpu.memory_space<vmem>>, vector<64x128xf32>
    tpu.vector_store %arg7[%c0_95, %c0_96], %96 {strides = array<i32>} : memref<64x128xf32, #tpu.memory_space<vmem>>, vector<64x128xf32>,
    %c0_97 = arith.constant 0 : index
    %c0_98 = arith.constant 0 : index
    %98 = vector.load %arg7[%c0_97, %c0_98] : memref<64x128xf32, #tpu.memory_space<vmem>>, vector<64x128xf32>
    %c0_99 = arith.constant 0 : index
    %c0_100 = arith.constant 0 : index
    %99 = vector.load %arg5[%c0_99, %c0_100] : memref<1x128xf32, #tpu.memory_space<vmem>>, vector<1x128xf32>
    %100 = vector.broadcast %99 : vector<1x128xf32> to vector<64x128xf32>
    %101 = arith.addf %98, %100 : vector<64x128xf32>
    %cst_101 = arith.constant 0.000000e+00 : f32
    %102 = vector.broadcast %cst_101 : f32 to vector<64x128xf32>
    %103 = arith.maximumf %101, %102 : vector<64x128xf32>
    %104 = vector.shape_cast %103 : vector<64x128xf32> to vector<1x8x8x128xf32>
    %105 = arith.truncf %104 : vector<1x8x8x128xf32> to vector<1x8x8x128xbf16>
    %c0_102 = arith.constant 0 : index
    %c0_103 = arith.constant 0 : index
    %c0_104 = arith.constant 0 : index
    %c0_105 = arith.constant 0 : index
    %106 = vector.load %arg6[%c0_102, %c0_103, %c0_104, %c0_105] : memref<1x8x8x128xbf16, #tpu.memory_space<vmem>>, vector<1x8x8x128xbf16>
    tpu.vector_store %arg6[%c0_102, %c0_103, %c0_104, %c0_105], %105 {strides = array<i32>} : memref<1x8x8x128xbf16, #tpu.memory_space<vmem>>, vector<1x8x8x128xbf16>,
    return
  }
  func.func @transform_0(%arg0: i32, %arg1: i32, %arg2: i32) -> (i32, i32, i32, i32) {
    %c0_i32 = arith.constant 0 : i32
    %c0_i32_0 = arith.constant 0 : i32
    %c0_i32_1 = arith.constant 0 : i32
    %c0_i32_2 = arith.constant 0 : i32
    return %arg1, %c0_i32, %c0_i32_0, %c0_i32_1 : i32, i32, i32, i32
  }
  func.func @transform_1(%arg0: i32, %arg1: i32, %arg2: i32) -> (i32, i32, i32) {
    %c0_i32 = arith.constant 0 : i32
    %c0_i32_0 = arith.constant 0 : i32
    %c0_i32_1 = arith.constant 0 : i32
    return %c0_i32, %c0_i32_0, %arg0 : i32, i32, i32
  }
  func.func @transform_2(%arg0: i32, %arg1: i32, %arg2: i32) -> (i32, i32) {
    %c0_i32 = arith.constant 0 : i32
    %c0_i32_0 = arith.constant 0 : i32
    return %c0_i32, %arg0 : i32, i32
  }
  func.func @transform_3(%arg0: i32, %arg1: i32, %arg2: i32) -> (i32, i32, i32, i32) {
    %c0_i32 = arith.constant 0 : i32
    %c0_i32_0 = arith.constant 0 : i32
    return %arg1, %arg2, %c0_i32, %arg0 : i32, i32, i32, i32
  }
}

</mosaic_0001>

<llo_original>
// kernel: tpu_custom_call.1
$region0: #{tpu_custom_call.1}
  #allocation0 [shape = 'u32[]', space=smem, size = 0x4, offset = 0x4, fixed_abs, tag = 'smem constant byte address 0x4 - core index']
  #allocation1 [shape = 'u32[72,128]{1,0:T(1,128)}', space=vmem, size = 0x9000, scoped, tag = 'internal scratch']
  #allocation2 [shape = 'f32[64,128]{1,0:T(8,128)}', space=vmem, size = 0x8000, scoped, tag = 'scratch operand']
  %s0 = inlined_call_operand.hbm [shape: bf16[1,10,10,128], index: 0, kind: input, shape index: {}]
  %s1 = inlined_call_operand.hbm [shape: bf16[3,384,256], index: 1, kind: input, shape index: {}]
  %s2 = inlined_call_operand.hbm [shape: f32[1,256], index: 2, kind: input, shape index: {}]
  %s3 = inlined_call_operand.hbm [shape: bf16[1,8,8,256], index: 3, kind: output, shape index: {}]
  %s4 = sld [smem:[#allocation0]]
  $region57: #{tpu_custom_call.1} parent=0
    _
  %s6 = ssub.s32 1, %s4
  %s7 = scalar_select 0, %s6, %s4
  $region1: #{tpu_custom_call.1} parent=0
    #allocation3 [shape = 'u8[40960]{0}', space=vmem, size = 0xa000, scoped, tag = 'input window, operand 0, single buffered']
    #allocation4 [shape = 's32[2]{0}', space=sflag, size = 0x8, scoped, tag = 'scoped memory for tpu_custom_call.1']
    #allocation5 [shape = 's32[2]{0}', space=sflag, size = 0x8, scoped, tag = 'scoped memory for tpu_custom_call.1']
    #allocation6 [shape = 'u8[589824]{0}', space=vmem, size = 0x90000, scoped, tag = 'input window, operand 1']
    #allocation7 [shape = 's32[2]{0}', space=sflag, size = 0x8, scoped, tag = 'scoped memory for tpu_custom_call.1']
    #allocation8 [shape = 'u8[1024]{0}', space=vmem, size = 0x400, scoped, tag = 'input window, operand 2']
    #allocation9 [shape = 'u8[32768]{0}', space=vmem, size = 0x8000, scoped, tag = 'output window, operand 0']
    %8 = vsyncpa [#allocation4], 0
    %9 = vsyncpa [#allocation7], 0
    %s10 = scalar_lea.sflag [#allocation7], 1
    %11 = vsyncpa %s10, 0
    %12 = vsyncpa [#allocation5], 0
    %s13 = scalar_lea.sflag [#allocation5], 1
    %14 = vsyncpa %s13, 0
    loop: start=0, step=1, limit=4
    $region2: #{tpu_custom_call.1} parent=1 // loop_pre_header
      _
    $region3: #{tpu_custom_call.1} parent=1 // loop_header
      %s16 = sphi 0, %s20
      %p17 = scmp.ge.s32.totalorder %s16, 4
      %s23 = sphi 0, %s42
      %s24 = sphi 0, %s38
      %s25 = sphi 0, %s34
      %s26 = sphi 0, %s23
      %s27 = sphi 0, %s24
      %s28 = sphi 0, %s25
      %s29 = sphi 0, %s26
      %s30 = sphi 0, %s27
      %s31 = sphi 0, %s28
      %s45 = sphi 0, %s47
      %s48 = sphi 0, %s45
      %s49 = sphi 0, %s48
      %s65 = sphi 0, %s49
      %s71 = sphi 0, %s73
      %s74 = sphi 0, %s71
      %s75 = sphi 0, %s74
      %s91 = sphi 0, %s75
      %s97 = sphi 0, %s99
      %s100 = sphi 0, %s97
      %s101 = sphi 0, %s100
      %s117 = sphi 0, %s101
      %s127 = sphi 0, %s129
      %s130 = sphi 0, %s127
      %s131 = sphi 0, %s130
      %s147 = sphi 0, %s131
    $region4: #{tpu_custom_call.1} parent=1 // loop_header_branch
      %19 = sbr.rel (%p17) target = $region8
    $region5: #{tpu_custom_call.1} parent=1 // loop_body
      %s21 = ssub.s32 %s16, 1
      %s22 = ssub.s32 %s16, 2
      %s32 = sadd.s32 1, %s25
      %p33 = scmp.ge.s32.totalorder %s32, 1
      %s34 = scalar_select %p33, 0, %s32
      %s35 = sadd.s32 1, %s24
      %s36 = scalar_select %p33, %s35, %s24
      %p37 = scmp.ge.s32.totalorder %s36, 1
      %s38 = scalar_select %p37, 0, %s36
      %s39 = sadd.s32 1, %s23
      %s40 = scalar_select %p37, %s39, %s23
      %p41 = scmp.ge.s32.totalorder %s40, 2
      %s42 = scalar_select %p41, 0, %s40
      %s43 = ssub.s32 %s24, %s38
      %p44 = scmp.eq.s32.totalorder %s43, 0
      %s46 = sadd.s32 %s45, 1
      %s47 = scalar_select %p44, %s45, %s46
      %p50 = pneg %p44
      %p51 = scmp.eq.s32.totalorder %s16, 1
      %p52 = por %p50, %p51
      %p53 = scmp.ne.s32.totalorder %s45, %s48
      %p54 = scmp.eq.s32.totalorder %s16, 0
      %p55 = por %p53, %p54
      %p56 = scmp.ne.s32.totalorder %s45, %s48
      %p57 = scmp.eq.s32.totalorder %s21, 1
      %p58 = por %p56, %p57
      %p59 = scmp.ne.s32.totalorder %s48, %s49
      %p60 = scmp.eq.s32.totalorder %s21, 0
      %p61 = por %p59, %p60
      %p62 = scmp.ne.s32.totalorder %s48, %s49
      %p63 = scmp.eq.s32.totalorder %s22, 1
      %p64 = por %p62, %p63
      %p66 = scmp.ne.s32.totalorder %s49, %s65
      %p67 = scmp.eq.s32.totalorder %s22, 0
      %p68 = por %p66, %p67
      %s69 = ssub.s32 %s23, %s42
      %p70 = scmp.eq.s32.totalorder %s69, 0
      %s72 = sadd.s32 %s71, 1
      %s73 = scalar_select %p70, %s71, %s72
      %p76 = pneg %p70
      %p77 = scmp.eq.s32.totalorder %s16, 1
      %p78 = por %p76, %p77
      %p79 = scmp.ne.s32.totalorder %s71, %s74
      %p80 = scmp.eq.s32.totalorder %s16, 0
      %p81 = por %p79, %p80
      %p82 = scmp.ne.s32.totalorder %s71, %s74
      %p83 = scmp.eq.s32.totalorder %s21, 1
      %p84 = por %p82, %p83
      %p85 = scmp.ne.s32.totalorder %s74, %s75
      %p86 = scmp.eq.s32.totalorder %s21, 0
      %p87 = por %p85, %p86
      %p88 = scmp.ne.s32.totalorder %s74, %s75
      %p89 = scmp.eq.s32.totalorder %s22, 1
      %p90 = por %p88, %p89
      %p92 = scmp.ne.s32.totalorder %s75, %s91
      %p93 = scmp.eq.s32.totalorder %s22, 0
      %p94 = por %p92, %p93
      %s95 = ssub.s32 %s23, %s42
      %p96 = scmp.eq.s32.totalorder %s95, 0
      %s98 = sadd.s32 %s97, 1
      %s99 = scalar_select %p96, %s97, %s98
      %p102 = pneg %p96
      %p103 = scmp.eq.s32.totalorder %s16, 1
      %p104 = por %p102, %p103
      %p105 = scmp.ne.s32.totalorder %s97, %s100
      %p106 = scmp.eq.s32.totalorder %s16, 0
      %p107 = por %p105, %p106
      %p108 = scmp.ne.s32.totalorder %s97, %s100
      %p109 = scmp.eq.s32.totalorder %s21, 1
      %p110 = por %p108, %p109
      %p111 = scmp.ne.s32.totalorder %s100, %s101
      %p112 = scmp.eq.s32.totalorder %s21, 0
      %p113 = por %p111, %p112
      %p114 = scmp.ne.s32.totalorder %s100, %s101
      %p115 = scmp.eq.s32.totalorder %s22, 1
      %p116 = por %p114, %p115
      %p118 = scmp.ne.s32.totalorder %s101, %s117
      %p119 = scmp.eq.s32.totalorder %s22, 0
      %p120 = por %p118, %p119
      %s121 = ssub.s32 %s24, %s38
      %s122 = ssub.s32 %s25, %s34
      %s123 = sor.u32 %s121, %s122
      %s124 = ssub.s32 %s23, %s42
      %s125 = sor.u32 %s123, %s124
      %p126 = scmp.eq.s32.totalorder %s125, 0
      %s128 = sadd.s32 %s127, 1
      %s129 = scalar_select %p126, %s127, %s128
      %p132 = pneg %p126
      %p133 = scmp.eq.s32.totalorder %s16, 1
      %p134 = por %p132, %p133
      %p135 = scmp.ne.s32.totalorder %s127, %s130
      %p136 = scmp.eq.s32.totalorder %s16, 0
      %p137 = por %p135, %p136
      %p138 = scmp.ne.s32.totalorder %s127, %s130
      %p139 = scmp.eq.s32.totalorder %s21, 1
      %p140 = por %p138, %p139
      %p141 = scmp.ne.s32.totalorder %s130, %s131
      %p142 = scmp.eq.s32.totalorder %s21, 0
      %p143 = por %p141, %p142
      %p144 = scmp.ne.s32.totalorder %s130, %s131
      %p145 = scmp.eq.s32.totalorder %s22, 1
      %p146 = por %p144, %p145
      %p148 = scmp.ne.s32.totalorder %s131, %s147
      %p149 = scmp.eq.s32.totalorder %s22, 0
      %p150 = por %p148, %p149
      %p151 = scmp.le.s32.totalorder 1, %s16
      %p152 = scmp.lt.s32.totalorder %s16, 3
      %p153 = pnand %p151, %p152
      %p154 = pneg %p153
      // Predicated region
      $region9: #{tpu_custom_call.1} parent=5 // pred_check
        _
      $region10: #{tpu_custom_call.1} parent=5 // pred_check_branch
        %156 = sbr.rel (%p153) target = $region12
      $region11: #{tpu_custom_call.1} parent=5 // pred_region
        %s157 = ssub.s32 %s16, 1
        // Predicated region
        $region13: #{tpu_custom_call.1} parent=11 // pred_check
          %p158 = pneg %p61
        $region14: #{tpu_custom_call.1} parent=11 // pred_check_branch
          %160 = sbr.rel (%p158) target = $region16
        $region15: #{tpu_custom_call.1} parent=11 // pred_region
          %162 = vsyncadd [#allocation4], 0
          %s163 = smul.addr %s27, 20
          %s164 = smul.addr %s163, 4
          %s165 = scalar_lea.hbm %s0, %s164
          %s166 = sshll.u32 %s165, 4
          %s167 = int_to_ptr.hbm [resolvable:$true] %s166
          %s168 = sshll.u32 [#allocation3], 4
          %s169 = int_to_ptr.vmem [resolvable:$true] %s168
          %174 = dma.hbm_to_vmem [thread:$0]  %s167, 1280, %s169, [#allocation4], 64, 64, 4
        $region16: #{tpu_custom_call.1} parent=11 // pred_fallthru
          _
      $region12: #{tpu_custom_call.1} parent=5 // pred_fallthru
        _
      %p175 = scmp.lt.s32.totalorder %s16, 2
      // Predicated region
      $region17: #{tpu_custom_call.1} parent=5 // pred_check
        %p176 = pneg %p175
      $region18: #{tpu_custom_call.1} parent=5 // pred_check_branch
        %178 = sbr.rel (%p176) target = $region20
      $region19: #{tpu_custom_call.1} parent=5 // pred_region
        // Predicated region
        $region21: #{tpu_custom_call.1} parent=19 // pred_check
          %p179 = pneg %p81
        $region22: #{tpu_custom_call.1} parent=19 // pred_check_branch
          %181 = sbr.rel (%p179) target = $region24
        $region23: #{tpu_custom_call.1} parent=19 // pred_region
          %s182 = sand.u32 %s16, 1
          %s183 = scalar_lea.sflag [#allocation7], %s182
          %s184 = sand.u32 %s71, 1
          %s185 = smul.addr %s184, 576
          %s186 = scalar_lea.vmem [#allocation6], %s185
          %188 = vsyncadd %s183, 0
          %s189 = smul.addr %s23, 4
          %s190 = scalar_lea.hbm %s1, %s189
          %s191 = sshll.u32 %s190, 4
          %s192 = int_to_ptr.hbm [resolvable:$true] %s191
          %s193 = sshll.u32 %s186, 4
          %s194 = int_to_ptr.vmem [resolvable:$true] %s193
          %199 = dma.hbm_to_vmem [thread:$0]  %s192, 9216, %s194, %s183, 128, 64, 4
        $region24: #{tpu_custom_call.1} parent=19 // pred_fallthru
          _
        // Predicated region
        $region25: #{tpu_custom_call.1} parent=19 // pred_check
          %p200 = pneg %p107
        $region26: #{tpu_custom_call.1} parent=19 // pred_check_branch
          %202 = sbr.rel (%p200) target = $region28
        $region27: #{tpu_custom_call.1} parent=19 // pred_region
          %s203 = sand.u32 %s16, 1
          %s204 = scalar_lea.sflag [#allocation7], %s203
          %s205 = sand.u32 %s97, 1
          %s206 = scalar_lea.vmem [#allocation8], %s205
          %208 = vsyncadd %s204, 0
          %s209 = scalar_lea.hbm %s2, %s23
          %s211 = sshll.u32 %s209, 4
          %s212 = int_to_ptr.hbm [resolvable:$true] %s211
          %s213 = sshll.u32 %s206, 4
          %s214 = int_to_ptr.vmem [resolvable:$true] %s213
          %216 = dma.hbm_to_vmem [thread:$0]  %s212, 16, %s214, %s204
        $region28: #{tpu_custom_call.1} parent=19 // pred_fallthru
          _
      $region20: #{tpu_custom_call.1} parent=5 // pred_fallthru
        _
      %p217 = scmp.le.s32.totalorder 1, %s16
      %p218 = scmp.lt.s32.totalorder %s16, 3
      %p219 = pnand %p217, %p218
      %p220 = pneg %p219
      // Predicated region
      $region29: #{tpu_custom_call.1} parent=5 // pred_check
        _
      $region30: #{tpu_custom_call.1} parent=5 // pred_check_branch
        %222 = sbr.rel (%p219) target = $region32
      $region31: #{tpu_custom_call.1} parent=5 // pred_region
        %s223 = ssub.s32 %s16, 1
        // Predicated region
        $region33: #{tpu_custom_call.1} parent=31 // pred_check
          %p224 = pneg %p61
        $region34: #{tpu_custom_call.1} parent=31 // pred_check_branch
          %226 = sbr.rel (%p224) target = $region36
        $region35: #{tpu_custom_call.1} parent=31 // pred_region
          %228 = dma.done [#allocation4], 1280
        $region36: #{tpu_custom_call.1} parent=31 // pred_fallthru
          _
        %s229 = sand.u32 %s21, 1
        %s230 = scalar_lea.sflag [#allocation7], %s229
        %s231 = sand.u32 %s74, 1
        %s232 = smul.addr %s231, 576
        %s233 = scalar_lea.vmem [#allocation6], %s232
        // Predicated region
        $region37: #{tpu_custom_call.1} parent=31 // pred_check
          %p234 = pneg %p87
        $region38: #{tpu_custom_call.1} parent=31 // pred_check_branch
          %236 = sbr.rel (%p234) target = $region40
        $region39: #{tpu_custom_call.1} parent=31 // pred_region
          %238 = dma.done %s230, 9216
        $region40: #{tpu_custom_call.1} parent=31 // pred_fallthru
          _
        %s239 = sand.u32 %s21, 1
        %s240 = scalar_lea.sflag [#allocation7], %s239
        %s241 = sand.u32 %s100, 1
        %s242 = scalar_lea.vmem [#allocation8], %s241
        // Predicated region
        $region41: #{tpu_custom_call.1} parent=31 // pred_check
          %p243 = pneg %p113
        $region42: #{tpu_custom_call.1} parent=31 // pred_check_branch
          %245 = sbr.rel (%p243) target = $region44
        $region43: #{tpu_custom_call.1} parent=31 // pred_region
          %247 = dma.done %s240, 16
        $region44: #{tpu_custom_call.1} parent=31 // pred_fallthru
          _
        %p248 = pneg %p61
        %p249 = pneg %p58
        %s250 = sand.u32 %s21, 1
        %s251 = scalar_lea.sflag [#allocation7], %s250
        %s252 = sand.u32 %s74, 1
        %s253 = smul.addr %s252, 576
        %s254 = scalar_lea.vmem [#allocation6], %s253
        %p255 = pneg %p87
        %p256 = pneg %p84
        %s257 = sand.u32 %s21, 1
        %s258 = scalar_lea.sflag [#allocation7], %s257
        %s259 = sand.u32 %s100, 1
        %s260 = scalar_lea.vmem [#allocation8], %s259
        %p261 = pneg %p113
        %p262 = pneg %p110
        %p263 = pneg %p143
        %p264 = pneg %p140
        %s265 = sand.u32 %s130, 1
        %s266 = scalar_lea.sflag [#allocation5], %s265
        %s267 = sand.u32 %s130, 1
        %s268 = smul.addr %s267, 32
        %s269 = scalar_lea.vmem [#allocation9], %s268
        %s270 = smul.u32 8, %s28
        %s271 = smul.u32 %s28, 8
        %s272 = smul.u32 %s271, 2
        %s273 = smul.addr %s272, 4
        %s274 = scalar_lea.vmem [#allocation3], %s273
        %v275 = vld [vmem:[%s274] sm:$0xf]
        %v276 = vld [vmem:[%s274 + $0x8] sm:$0xf]
        %v277 = vld [vmem:[%s274 + $0x10] sm:$0xf]
        %v278 = vld [vmem:[%s274 + $0x18] sm:$0xf]
        %v279 = vld [vmem:[%s274 + $0x20] sm:$0xf]
        %v280 = vld [vmem:[%s274 + $0x28] sm:$0xf]
        %v281 = vld [vmem:[%s274 + $0x30] sm:$0xf]
        %v282 = vld [vmem:[%s274 + $0x38] sm:$0xf]
        %v283 = vld [vmem:[%s233] sm:$0xf]
        %v284 = vld [vmem:[%s233 + $0x4] sm:$0xf]
        %v285 = vld [vmem:[%s233 + $0x8] sm:$0xf]
        %v286 = vld [vmem:[%s233 + $0xc] sm:$0xf]
        %v287 = vld [vmem:[%s233 + $0x10] sm:$0xf]
        %v288 = vld [vmem:[%s233 + $0x14] sm:$0xf]
        %v289 = vld [vmem:[%s233 + $0x18] sm:$0xf]
        %v290 = vld [vmem:[%s233 + $0x1c] sm:$0xf]
        %v291 = vld [vmem:[%s233 + $0x20] sm:$0xf]
        %v292 = vld [vmem:[%s233 + $0x24] sm:$0xf]
        %v293 = vld [vmem:[%s233 + $0x28] sm:$0xf]
        %v294 = vld [vmem:[%s233 + $0x2c] sm:$0xf]
        %v295 = vld [vmem:[%s233 + $0x30] sm:$0xf]
        %v296 = vld [vmem:[%s233 + $0x34] sm:$0xf]
        %v297 = vld [vmem:[%s233 + $0x38] sm:$0xf]
        %v298 = vld [vmem:[%s233 + $0x3c] sm:$0xf]
        %v307 = vunpack.c.l.b16 %v275
        %v308 = vunpack.c.l.b16 %v276
        %v309 = vunpack.c.l.b16 %v277
        %v310 = vunpack.c.l.b16 %v278
        %v311 = vunpack.c.l.b16 %v279
        %v312 = vunpack.c.l.b16 %v280
        %v313 = vunpack.c.l.b16 %v281
        %v314 = vunpack.c.l.b16 %v282
        %v315 = vpack.c.b16 %v308, %v307
        %v316 = vpack.c.b16 %v310, %v309
        %v317 = vpack.c.b16 %v312, %v311
        %v318 = vpack.c.b16 %v314, %v313
        %v339 = vunpack.c.l.b16 %v283
        %v340 = vunpack.c.l.b16 %v284
        %v341 = vunpack.c.l.b16 %v285
        %v342 = vunpack.c.l.b16 %v286
        %v343 = vunpack.c.l.b16 %v287
        %v344 = vunpack.c.l.b16 %v288
        %v345 = vunpack.c.l.b16 %v289
        %v346 = vunpack.c.l.b16 %v290
        %v347 = vunpack.c.l.b16 %v291
        %v348 = vunpack.c.l.b16 %v292
        %v349 = vunpack.c.l.b16 %v293
        %v350 = vunpack.c.l.b16 %v294
        %v351 = vunpack.c.l.b16 %v295
        %v352 = vunpack.c.l.b16 %v296
        %v353 = vunpack.c.l.b16 %v297
        %v354 = vunpack.c.l.b16 %v298
        %v355 = vpack.c.b16 %v340, %v339
        %v356 = vpack.c.b16 %v342, %v341
        %v357 = vpack.c.b16 %v344, %v343
        %v358 = vpack.c.b16 %v346, %v345
        %v359 = vpack.c.b16 %v348, %v347
        %v360 = vpack.c.b16 %v350, %v349
        %v361 = vpack.c.b16 %v352, %v351
        %v362 = vpack.c.b16 %v354, %v353
        %371 = vmatpush.bf16.msra.mxu0 %v362
        %372 = vmatpush.bf16.msra.mxu0 %v361
        %373 = vmatpush.bf16.msra.mxu0 %v360
        %374 = vmatpush.bf16.msra.mxu0 %v359
        %375 = vmatpush.bf16.msra.mxu0 %v358
        %376 = vmatpush.bf16.msra.mxu0 %v357
        %377 = vmatpush.bf16.msra.mxu0 %v356
        %378 = vmatpush.bf16.msra.mxu0 %v355
        %379 = vmatmul.bf16.gmra.mxu0 %v315
        %v380 = vpop.f32.mrf.mxu0
        %v381 = vadd.f32 0.0, %v380
        %v382 = vpop.f32.mrf.mxu0
        %v383 = vadd.f32 0.0, %v382
        %384 = vmatmul.bf16.gmra.mxu0 %v316
        %v385 = vpop.f32.mrf.mxu0
        %v386 = vadd.f32 0.0, %v385
        %v387 = vpop.f32.mrf.mxu0
        %v388 = vadd.f32 0.0, %v387
        %389 = vmatmul.bf16.gmra.mxu0 %v317
        %v390 = vpop.f32.mrf.mxu0
        %v391 = vadd.f32 0.0, %v390
        %v392 = vpop.f32.mrf.mxu0
        %v393 = vadd.f32 0.0, %v392
        %394 = vmatmul.bf16.gmra.mxu0 %v318
        %v395 = vpop.f32.mrf.mxu0
        %v396 = vadd.f32 0.0, %v395
        %v397 = vpop.f32.mrf.mxu0
        %v398 = vadd.f32 0.0, %v397
        %399 = vdwg.mxu0
        %400 = vst [vmem:[#allocation2] sm:$0xff] %v381
        %401 = vst [vmem:[#allocation2 + $0x8] sm:$0xff] %v383
        %402 = vst [vmem:[#allocation2 + $0x10] sm:$0xff] %v386
        %403 = vst [vmem:[#allocation2 + $0x18] sm:$0xff] %v388
        %404 = vst [vmem:[#allocation2 + $0x20] sm:$0xff] %v391
        %405 = vst [vmem:[#allocation2 + $0x28] sm:$0xff] %v393
        %406 = vst [vmem:[#allocation2 + $0x30] sm:$0xff] %v396
        %407 = vst [vmem:[#allocation2 + $0x38] sm:$0xff] %v398
        %v408 = vld [vmem:[%s274] sm:$0xf]
        %v409 = vld [vmem:[%s274 + $0x4] sm:$0x1]
        %v410 = vld [vmem:[%s274 + $0x8] sm:$0xf]
        %v411 = vld [vmem:[%s274 + $0xc] sm:$0x1]
        %v412 = vld [vmem:[%s274 + $0x10] sm:$0xf]
        %v413 = vld [vmem:[%s274 + $0x14] sm:$0x1]
        %v414 = vld [vmem:[%s274 + $0x18] sm:$0xf]
        %v415 = vld [vmem:[%s274 + $0x1c] sm:$0x1]
        %v416 = vld [vmem:[%s274 + $0x20] sm:$0xf]
        %v417 = vld [vmem:[%s274 + $0x24] sm:$0x1]
        %v418 = vld [vmem:[%s274 + $0x28] sm:$0xf]
        %v419 = vld [vmem:[%s274 + $0x2c] sm:$0x1]
        %v420 = vld [vmem:[%s274 + $0x30] sm:$0xf]
        %v421 = vld [vmem:[%s274 + $0x34] sm:$0x1]
        %v422 = vld [vmem:[%s274 + $0x38] sm:$0xf]
        %v423 = vld [vmem:[%s274 + $0x3c] sm:$0x1]
        %vm424 = vsmask.f32 3328
        %vm425 = vsmask.f32 7440
        %vm426 = vmor %vm424, %vm425
        %v428 = vshrl.u32 %v408, 16
        %v430 = vrot.slane %v428, 4
        %v431 = vshll.u32 %v408, 16
        %v433 = vrot.slane %v431, 5
        %v434 = vor.u32 %v430, %v433
        %v435 = vrot.slane %v434, 4
        %v437 = vshll.u32 %v409, 16
        %v439 = vrot.slane %v437, 5
        %v440 = vsel %vm426, %v435, %v439
        %v442 = vshrl.u32 %v410, 16
        %v444 = vrot.slane %v442, 4
        %v445 = vshll.u32 %v410, 16
        %v447 = vrot.slane %v445, 5
        %v448 = vor.u32 %v444, %v447
        %v449 = vrot.slane %v448, 4
        %v451 = vshll.u32 %v411, 16
        %v453 = vrot.slane %v451, 5
        %v454 = vsel %vm426, %v449, %v453
        %v456 = vshrl.u32 %v412, 16
        %v458 = vrot.slane %v456, 4
        %v459 = vshll.u32 %v412, 16
        %v461 = vrot.slane %v459, 5
        %v462 = vor.u32 %v458, %v461
        %v463 = vrot.slane %v462, 4
        %v465 = vshll.u32 %v413, 16
        %v467 = vrot.slane %v465, 5
        %v468 = vsel %vm426, %v463, %v467
        %v470 = vshrl.u32 %v414, 16
        %v472 = vrot.slane %v470, 4
        %v473 = vshll.u32 %v414, 16
        %v475 = vrot.slane %v473, 5
        %v476 = vor.u32 %v472, %v475
        %v477 = vrot.slane %v476, 4
        %v479 = vshll.u32 %v415, 16
        %v481 = vrot.slane %v479, 5
        %v482 = vsel %vm426, %v477, %v481
        %v484 = vshrl.u32 %v416, 16
        %v486 = vrot.slane %v484, 4
        %v487 = vshll.u32 %v416, 16
        %v489 = vrot.slane %v487, 5
        %v490 = vor.u32 %v486, %v489
        %v491 = vrot.slane %v490, 4
        %v493 = vshll.u32 %v417, 16
        %v495 = vrot.slane %v493, 5
        %v496 = vsel %vm426, %v491, %v495
        %v498 = vshrl.u32 %v418, 16
        %v500 = vrot.slane %v498, 4
        %v501 = vshll.u32 %v418, 16
        %v503 = vrot.slane %v501, 5
        %v504 = vor.u32 %v500, %v503
        %v505 = vrot.slane %v504, 4
        %v507 = vshll.u32 %v419, 16
        %v509 = vrot.slane %v507, 5
        %v510 = vsel %vm426, %v505, %v509
        %v512 = vshrl.u32 %v420, 16
        %v514 = vrot.slane %v512, 4
        %v515 = vshll.u32 %v420, 16
        %v517 = vrot.slane %v515, 5
        %v518 = vor.u32 %v514, %v517
        %v519 = vrot.slane %v518, 4
        %v521 = vshll.u32 %v421, 16
        %v523 = vrot.slane %v521, 5
        %v524 = vsel %vm426, %v519, %v523
        %v526 = vshrl.u32 %v422, 16
        %v528 = vrot.slane %v526, 4
        %v529 = vshll.u32 %v422, 16
        %v531 = vrot.slane %v529, 5
        %v532 = vor.u32 %v528, %v531
        %v533 = vrot.slane %v532, 4
        %v535 = vshll.u32 %v423, 16
        %v537 = vrot.slane %v535, 5
        %v538 = vsel %vm426, %v533, %v537
        %v539 = vld [vmem:[%s233 + $0x40] sm:$0xf]
        %v540 = vld [vmem:[%s233 + $0x44] sm:$0xf]
        %v541 = vld [vmem:[%s233 + $0x48] sm:$0xf]
        %v542 = vld [vmem:[%s233 + $0x4c] sm:$0xf]
        %v543 = vld [vmem:[%s233 + $0x50] sm:$0xf]
        %v544 = vld [vmem:[%s233 + $0x54] sm:$0xf]
        %v545 = vld [vmem:[%s233 + $0x58] sm:$0xf]
        %v546 = vld [vmem:[%s233 + $0x5c] sm:$0xf]
        %v547 = vld [vmem:[%s233 + $0x60] sm:$0xf]
        %v548 = vld [vmem:[%s233 + $0x64] sm:$0xf]
        %v549 = vld [vmem:[%s233 + $0x68] sm:$0xf]
        %v550 = vld [vmem:[%s233 + $0x6c] sm:$0xf]
        %v551 = vld [vmem:[%s233 + $0x70] sm:$0xf]
        %v552 = vld [vmem:[%s233 + $0x74] sm:$0xf]
        %v553 = vld [vmem:[%s233 + $0x78] sm:$0xf]
        %v554 = vld [vmem:[%s233 + $0x7c] sm:$0xf]
        %v555 = vunpack.c.l.b16 %v440
        %v556 = vunpack.c.l.b16 %v454
        %v557 = vunpack.c.l.b16 %v468
        %v558 = vunpack.c.l.b16 %v482
        %v559 = vunpack.c.l.b16 %v496
        %v560 = vunpack.c.l.b16 %v510
        %v561 = vunpack.c.l.b16 %v524
        %v562 = vunpack.c.l.b16 %v538
        %v563 = vpack.c.b16 %v556, %v555
        %v564 = vpack.c.b16 %v558, %v557
        %v565 = vpack.c.b16 %v560, %v559
        %v566 = vpack.c.b16 %v562, %v561
        %v587 = vunpack.c.l.b16 %v539
        %v588 = vunpack.c.l.b16 %v540
        %v589 = vunpack.c.l.b16 %v541
        %v590 = vunpack.c.l.b16 %v542
        %v591 = vunpack.c.l.b16 %v543
        %v592 = vunpack.c.l.b16 %v544
        %v593 = vunpack.c.l.b16 %v545
        %v594 = vunpack.c.l.b16 %v546
        %v595 = vunpack.c.l.b16 %v547
        %v596 = vunpack.c.l.b16 %v548
        %v597 = vunpack.c.l.b16 %v549
        %v598 = vunpack.c.l.b16 %v550
        %v599 = vunpack.c.l.b16 %v551
        %v600 = vunpack.c.l.b16 %v552
        %v601 = vunpack.c.l.b16 %v553
        %v602 = vunpack.c.l.b16 %v554
        %v603 = vpack.c.b16 %v588, %v587
        %v604 = vpack.c.b16 %v590, %v589
        %v605 = vpack.c.b16 %v592, %v591
        %v606 = vpack.c.b16 %v594, %v593
        %v607 = vpack.c.b16 %v596, %v595
        %v608 = vpack.c.b16 %v598, %v597
        %v609 = vpack.c.b16 %v600, %v599
        %v610 = vpack.c.b16 %v602, %v601
        %619 = vmatpush.bf16.msra.mxu0 %v610
        %620 = vmatpush.bf16.msra.mxu0 %v609
        %621 = vmatpush.bf16.msra.mxu0 %v608
        %622 = vmatpush.bf16.msra.mxu0 %v607
        %623 = vmatpush.bf16.msra.mxu0 %v606
        %624 = vmatpush.bf16.msra.mxu0 %v605
        %625 = vmatpush.bf16.msra.mxu0 %v604
        %626 = vmatpush.bf16.msra.mxu0 %v603
        %627 = vmatmul.bf16.gmra.mxu0 %v563
        %v628 = vpop.f32.mrf.mxu0
        %v629 = vadd.f32 0.0, %v628
        %v630 = vpop.f32.mrf.mxu0
        %v631 = vadd.f32 0.0, %v630
        %632 = vmatmul.bf16.gmra.mxu0 %v564
        %v633 = vpop.f32.mrf.mxu0
        %v634 = vadd.f32 0.0, %v633
        %v635 = vpop.f32.mrf.mxu0
        %v636 = vadd.f32 0.0, %v635
        %637 = vmatmul.bf16.gmra.mxu0 %v565
        %v638 = vpop.f32.mrf.mxu0
        %v639 = vadd.f32 0.0, %v638
        %v640 = vpop.f32.mrf.mxu0
        %v641 = vadd.f32 0.0, %v640
        %642 = vmatmul.bf16.gmra.mxu0 %v566
        %v643 = vpop.f32.mrf.mxu0
        %v644 = vadd.f32 0.0, %v643
        %v645 = vpop.f32.mrf.mxu0
        %v646 = vadd.f32 0.0, %v645
        %647 = vdwg.mxu0
        %v648 = vld [vmem:[#allocation2] sm:$0xff]
        %v649 = vld [vmem:[#allocation2 + $0x8] sm:$0xff]
        %v650 = vld [vmem:[#allocation2 + $0x10] sm:$0xff]
        %v651 = vld [vmem:[#allocation2 + $0x18] sm:$0xff]
        %v652 = vld [vmem:[#allocation2 + $0x20] sm:$0xff]
        %v653 = vld [vmem:[#allocation2 + $0x28] sm:$0xff]
        %v654 = vld [vmem:[#allocation2 + $0x30] sm:$0xff]
        %v655 = vld [vmem:[#allocation2 + $0x38] sm:$0xff]
        %v656 = vadd.f32 %v648, %v629
        %v657 = vadd.f32 %v649, %v631
        %v658 = vadd.f32 %v650, %v634
        %v659 = vadd.f32 %v651, %v636
        %v660 = vadd.f32 %v652, %v639
        %v661 = vadd.f32 %v653, %v641
        %v662 = vadd.f32 %v654, %v644
        %v663 = vadd.f32 %v655, %v646
        %664 = vst [vmem:[#allocation2] sm:$0xff] %v656
        %665 = vst [vmem:[#allocation2 + $0x8] sm:$0xff] %v657
        %666 = vst [vmem:[#allocation2 + $0x10] sm:$0xff] %v658
        %667 = vst [vmem:[#allocation2 + $0x18] sm:$0xff] %v659
        %668 = vst [vmem:[#allocation2 + $0x20] sm:$0xff] %v660
        %669 = vst [vmem:[#allocation2 + $0x28] sm:$0xff] %v661
        %670 = vst [vmem:[#allocation2 + $0x30] sm:$0xff] %v662
        %671 = vst [vmem:[#allocation2 + $0x38] sm:$0xff] %v663
        %v672 = vld [vmem:[%s274] sm:$0xe]
        %v673 = vld [vmem:[%s274 + $0x4] sm:$0x1]
        %v674 = vld [vmem:[%s274 + $0x8] sm:$0xe]
        %v675 = vld [vmem:[%s274 + $0xc] sm:$0x1]
        %v676 = vld [vmem:[%s274 + $0x10] sm:$0xe]
        %v677 = vld [vmem:[%s274 + $0x14] sm:$0x1]
        %v678 = vld [vmem:[%s274 + $0x18] sm:$0xe]
        %v679 = vld [vmem:[%s274 + $0x1c] sm:$0x1]
        %v680 = vld [vmem:[%s274 + $0x20] sm:$0xe]
        %v681 = vld [vmem:[%s274 + $0x24] sm:$0x1]
        %v682 = vld [vmem:[%s274 + $0x28] sm:$0xe]
        %v683 = vld [vmem:[%s274 + $0x2c] sm:$0x1]
        %v684 = vld [vmem:[%s274 + $0x30] sm:$0xe]
        %v685 = vld [vmem:[%s274 + $0x34] sm:$0x1]
        %v686 = vld [vmem:[%s274 + $0x38] sm:$0xe]
        %v687 = vld [vmem:[%s274 + $0x3c] sm:$0x1]
        %vm704 = vcmask 1042432
        %vm705 = vcmask 1046532
        %vm706 = vmor %vm704, %vm705
        %v707 = vrot.slane %v672, 5
        %v708 = vrot.slane %v707, 4
        %v709 = vrot.slane %v673, 5
        %v710 = vsel %vm706, %v708, %v709
        %v711 = vrot.slane %v674, 5
        %v712 = vrot.slane %v711, 4
        %v713 = vrot.slane %v675, 5
        %v714 = vsel %vm706, %v712, %v713
        %v715 = vrot.slane %v676, 5
        %v716 = vrot.slane %v715, 4
        %v717 = vrot.slane %v677, 5
        %v718 = vsel %vm706, %v716, %v717
        %v719 = vrot.slane %v678, 5
        %v720 = vrot.slane %v719, 4
        %v721 = vrot.slane %v679, 5
        %v722 = vsel %vm706, %v720, %v721
        %v723 = vrot.slane %v680, 5
        %v724 = vrot.slane %v723, 4
        %v725 = vrot.slane %v681, 5
        %v726 = vsel %vm706, %v724, %v725
        %v727 = vrot.slane %v682, 5
        %v728 = vrot.slane %v727, 4
        %v729 = vrot.slane %v683, 5
        %v730 = vsel %vm706, %v728, %v729
        %v731 = vrot.slane %v684, 5
        %v732 = vrot.slane %v731, 4
        %v733 = vrot.slane %v685, 5
        %v734 = vsel %vm706, %v732, %v733
        %v735 = vrot.slane %v686, 5
        %v736 = vrot.slane %v735, 4
        %v737 = vrot.slane %v687, 5
        %v738 = vsel %vm706, %v736, %v737
        %v739 = vld [vmem:[%s233 + $0x80] sm:$0xf]
        %v740 = vld [vmem:[%s233 + $0x84] sm:$0xf]
        %v741 = vld [vmem:[%s233 + $0x88] sm:$0xf]
        %v742 = vld [vmem:[%s233 + $0x8c] sm:$0xf]
        %v743 = vld [vmem:[%s233 + $0x90] sm:$0xf]
        %v744 = vld [vmem:[%s233 + $0x94] sm:$0xf]
        %v745 = vld [vmem:[%s233 + $0x98] sm:$0xf]
        %v746 = vld [vmem:[%s233 + $0x9c] sm:$0xf]
        %v747 = vld [vmem:[%s233 + $0xa0] sm:$0xf]
        %v748 = vld [vmem:[%s233 + $0xa4] sm:$0xf]
        %v749 = vld [vmem:[%s233 + $0xa8] sm:$0xf]
        %v750 = vld [vmem:[%s233 + $0xac] sm:$0xf]
        %v751 = vld [vmem:[%s233 + $0xb0] sm:$0xf]
        %v752 = vld [vmem:[%s233 + $0xb4] sm:$0xf]
        %v753 = vld [vmem:[%s233 + $0xb8] sm:$0xf]
        %v754 = vld [vmem:[%s233 + $0xbc] sm:$0xf]
        %v755 = vunpack.c.l.b16 %v710
        %v756 = vunpack.c.l.b16 %v714
        %v757 = vunpack.c.l.b16 %v718
        %v758 = vunpack.c.l.b16 %v722
        %v759 = vunpack.c.l.b16 %v726
        %v760 = vunpack.c.l.b16 %v730
        %v761 = vunpack.c.l.b16 %v734
        %v762 = vunpack.c.l.b16 %v738
        %v763 = vpack.c.b16 %v756, %v755
        %v764 = vpack.c.b16 %v758, %v757
        %v765 = vpack.c.b16 %v760, %v759
        %v766 = vpack.c.b16 %v762, %v761
        %v787 = vunpack.c.l.b16 %v739
        %v788 = vunpack.c.l.b16 %v740
        %v789 = vunpack.c.l.b16 %v741
        %v790 = vunpack.c.l.b16 %v742
        %v791 = vunpack.c.l.b16 %v743
        %v792 = vunpack.c.l.b16 %v744
        %v793 = vunpack.c.l.b16 %v745
        %v794 = vunpack.c.l.b16 %v746
        %v795 = vunpack.c.l.b16 %v747
        %v796 = vunpack.c.l.b16 %v748
        %v797 = vunpack.c.l.b16 %v749
        %v798 = vunpack.c.l.b16 %v750
        %v799 = vunpack.c.l.b16 %v751
        %v800 = vunpack.c.l.b16 %v752
        %v801 = vunpack.c.l.b16 %v753
        %v802 = vunpack.c.l.b16 %v754
        %v803 = vpack.c.b16 %v788, %v787
        %v804 = vpack.c.b16 %v790, %v789
        %v805 = vpack.c.b16 %v792, %v791
        %v806 = vpack.c.b16 %v794, %v793
        %v807 = vpack.c.b16 %v796, %v795
        %v808 = vpack.c.b16 %v798, %v797
        %v809 = vpack.c.b16 %v800, %v799
        %v810 = vpack.c.b16 %v802, %v801
        %819 = vmatpush.bf16.msra.mxu0 %v810
        %820 = vmatpush.bf16.msra.mxu0 %v809
        %821 = vmatpush.bf16.msra.mxu0 %v808
        %822 = vmatpush.bf16.msra.mxu0 %v807
        %823 = vmatpush.bf16.msra.mxu0 %v806
        %824 = vmatpush.bf16.msra.mxu0 %v805
        %825 = vmatpush.bf16.msra.mxu0 %v804
        %826 = vmatpush.bf16.msra.mxu0 %v803
        %827 = vmatmul.bf16.gmra.mxu0 %v763
        %v828 = vpop.f32.mrf.mxu0
        %v829 = vadd.f32 0.0, %v828
        %v830 = vpop.f32.mrf.mxu0
        %v831 = vadd.f32 0.0, %v830
        %832 = vmatmul.bf16.gmra.mxu0 %v764
        %v833 = vpop.f32.mrf.mxu0
        %v834 = vadd.f32 0.0, %v833
        %v835 = vpop.f32.mrf.mxu0
        %v836 = vadd.f32 0.0, %v835
        %837 = vmatmul.bf16.gmra.mxu0 %v765
        %v838 = vpop.f32.mrf.mxu0
        %v839 = vadd.f32 0.0, %v838
        %v840 = vpop.f32.mrf.mxu0
        %v841 = vadd.f32 0.0, %v840
        %842 = vmatmul.bf16.gmra.mxu0 %v766
        %v843 = vpop.f32.mrf.mxu0
        %v844 = vadd.f32 0.0, %v843
        %v845 = vpop.f32.mrf.mxu0
        %v846 = vadd.f32 0.0, %v845
        %847 = vdwg.mxu0
        %v848 = vld [vmem:[#allocation2] sm:$0xff]
        %v849 = vld [vmem:[#allocation2 + $0x8] sm:$0xff]
        %v850 = vld [vmem:[#allocation2 + $0x10] sm:$0xff]
        %v851 = vld [vmem:[#allocation2 + $0x18] sm:$0xff]
        %v852 = vld [vmem:[#allocation2 + $0x20] sm:$0xff]
        %v853 = vld [vmem:[#allocation2 + $0x28] sm:$0xff]
        %v854 = vld [vmem:[#allocation2 + $0x30] sm:$0xff]
        %v855 = vld [vmem:[#allocation2 + $0x38] sm:$0xff]
        %v856 = vadd.f32 %v848, %v829
        %v857 = vadd.f32 %v849, %v831
        %v858 = vadd.f32 %v850, %v834
        %v859 = vadd.f32 %v851, %v836
        %v860 = vadd.f32 %v852, %v839
        %v861 = vadd.f32 %v853, %v841
        %v862 = vadd.f32 %v854, %v844
        %v863 = vadd.f32 %v855, %v846
        %864 = vst [vmem:[#allocation2] sm:$0xff] %v856
        %865 = vst [vmem:[#allocation2 + $0x8] sm:$0xff] %v857
        %866 = vst [vmem:[#allocation2 + $0x10] sm:$0xff] %v858
        %867 = vst [vmem:[#allocation2 + $0x18] sm:$0xff] %v859
        %868 = vst [vmem:[#allocation2 + $0x20] sm:$0xff] %v860
        %869 = vst [vmem:[#allocation2 + $0x28] sm:$0xff] %v861
        %870 = vst [vmem:[#allocation2 + $0x30] sm:$0xff] %v862
        %871 = vst [vmem:[#allocation2 + $0x38] sm:$0xff] %v863
        %s872 = sadd.s32 %s271, 1
        %s873 = smul.u32 %s872, 2
        %s874 = smul.addr %s873, 4
        %s875 = scalar_lea.vmem [#allocation3], %s874
        %v876 = vld [vmem:[%s875] sm:$0xf]
        %v877 = vld [vmem:[%s875 + $0x8] sm:$0xf]
        %v878 = vld [vmem:[%s875 + $0x10] sm:$0xf]
        %v879 = vld [vmem:[%s875 + $0x18] sm:$0xf]
        %v880 = vld [vmem:[%s875 + $0x20] sm:$0xf]
        %v881 = vld [vmem:[%s875 + $0x28] sm:$0xf]
        %v882 = vld [vmem:[%s875 + $0x30] sm:$0xf]
        %v883 = vld [vmem:[%s875 + $0x38] sm:$0xf]
        %s884 = scalar_lea.vmem %s233, 192 [#allocation6]
        %v885 = vld [vmem:[%s884] sm:$0xf]
        %v886 = vld [vmem:[%s884 + $0x4] sm:$0xf]
        %v887 = vld [vmem:[%s884 + $0x8] sm:$0xf]
        %v888 = vld [vmem:[%s884 + $0xc] sm:$0xf]
        %v889 = vld [vmem:[%s884 + $0x10] sm:$0xf]
        %v890 = vld [vmem:[%s884 + $0x14] sm:$0xf]
        %v891 = vld [vmem:[%s884 + $0x18] sm:$0xf]
        %v892 = vld [vmem:[%s884 + $0x1c] sm:$0xf]
        %v893 = vld [vmem:[%s884 + $0x20] sm:$0xf]
        %v894 = vld [vmem:[%s884 + $0x24] sm:$0xf]
        %v895 = vld [vmem:[%s884 + $0x28] sm:$0xf]
        %v896 = vld [vmem:[%s884 + $0x2c] sm:$0xf]
        %v897 = vld [vmem:[%s884 + $0x30] sm:$0xf]
        %v898 = vld [vmem:[%s884 + $0x34] sm:$0xf]
        %v899 = vld [vmem:[%s884 + $0x38] sm:$0xf]
        %v900 = vld [vmem:[%s884 + $0x3c] sm:$0xf]
        %v909 = vunpack.c.l.b16 %v876
        %v910 = vunpack.c.l.b16 %v877
        %v911 = vunpack.c.l.b16 %v878
        %v912 = vunpack.c.l.b16 %v879
        %v913 = vunpack.c.l.b16 %v880
        %v914 = vunpack.c.l.b16 %v881
        %v915 = vunpack.c.l.b16 %v882
        %v916 = vunpack.c.l.b16 %v883
        %v917 = vpack.c.b16 %v910, %v909
        %v918 = vpack.c.b16 %v912, %v911
        %v919 = vpack.c.b16 %v914, %v913
        %v920 = vpack.c.b16 %v916, %v915
        %v941 = vunpack.c.l.b16 %v885
        %v942 = vunpack.c.l.b16 %v886
        %v943 = vunpack.c.l.b16 %v887
        %v944 = vunpack.c.l.b16 %v888
        %v945 = vunpack.c.l.b16 %v889
        %v946 = vunpack.c.l.b16 %v890
        %v947 = vunpack.c.l.b16 %v891
        %v948 = vunpack.c.l.b16 %v892
        %v949 = vunpack.c.l.b16 %v893
        %v950 = vunpack.c.l.b16 %v894
        %v951 = vunpack.c.l.b16 %v895
        %v952 = vunpack.c.l.b16 %v896
        %v953 = vunpack.c.l.b16 %v897
        %v954 = vunpack.c.l.b16 %v898
        %v955 = vunpack.c.l.b16 %v899
        %v956 = vunpack.c.l.b16 %v900
        %v957 = vpack.c.b16 %v942, %v941
        %v958 = vpack.c.b16 %v944, %v943
        %v959 = vpack.c.b16 %v946, %v945
        %v960 = vpack.c.b16 %v948, %v947
        %v961 = vpack.c.b16 %v950, %v949
        %v962 = vpack.c.b16 %v952, %v951
        %v963 = vpack.c.b16 %v954, %v953
        %v964 = vpack.c.b16 %v956, %v955
        %973 = vmatpush.bf16.msra.mxu0 %v964
        %974 = vmatpush.bf16.msra.mxu0 %v963
        %975 = vmatpush.bf16.msra.mxu0 %v962
        %976 = vmatpush.bf16.msra.mxu0 %v961
        %977 = vmatpush.bf16.msra.mxu0 %v960
        %978 = vmatpush.bf16.msra.mxu0 %v959
        %979 = vmatpush.bf16.msra.mxu0 %v958
        %980 = vmatpush.bf16.msra.mxu0 %v957
        %981 = vmatmul.bf16.gmra.mxu0 %v917
        %v982 = vpop.f32.mrf.mxu0
        %v983 = vadd.f32 0.0, %v982
        %v984 = vpop.f32.mrf.mxu0
        %v985 = vadd.f32 0.0, %v984
        %986 = vmatmul.bf16.gmra.mxu0 %v918
        %v987 = vpop.f32.mrf.mxu0
        %v988 = vadd.f32 0.0, %v987
        %v989 = vpop.f32.mrf.mxu0
        %v990 = vadd.f32 0.0, %v989
        %991 = vmatmul.bf16.gmra.mxu0 %v919
        %v992 = vpop.f32.mrf.mxu0
        %v993 = vadd.f32 0.0, %v992
        %v994 = vpop.f32.mrf.mxu0
        %v995 = vadd.f32 0.0, %v994
        %996 = vmatmul.bf16.gmra.mxu0 %v920
        %v997 = vpop.f32.mrf.mxu0
        %v998 = vadd.f32 0.0, %v997
        %v999 = vpop.f32.mrf.mxu0
        %v1000 = vadd.f32 0.0, %v999
        %1001 = vdwg.mxu0
        %v1002 = vld [vmem:[#allocation2] sm:$0xff]
        %v1003 = vld [vmem:[#allocation2 + $0x8] sm:$0xff]
        %v1004 = vld [vmem:[#allocation2 + $0x10] sm:$0xff]
        %v1005 = vld [vmem:[#allocation2 + $0x18] sm:$0xff]
        %v1006 = vld [vmem:[#allocation2 + $0x20] sm:$0xff]
        %v1007 = vld [vmem:[#allocation2 + $0x28] sm:$0xff]
        %v1008 = vld [vmem:[#allocation2 + $0x30] sm:$0xff]
        %v1009 = vld [vmem:[#allocation2 + $0x38] sm:$0xff]
        %v1010 = vadd.f32 %v1002, %v983
        %v1011 = vadd.f32 %v1003, %v985
        %v1012 = vadd.f32 %v1004, %v988
        %v1013 = vadd.f32 %v1005, %v990
        %v1014 = vadd.f32 %v1006, %v993
        %v1015 = vadd.f32 %v1007, %v995
        %v1016 = vadd.f32 %v1008, %v998
        %v1017 = vadd.f32 %v1009, %v1000
        %1018 = vst [vmem:[#allocation2] sm:$0xff] %v1010
        %1019 = vst [vmem:[#allocation2 + $0x8] sm:$0xff] %v1011
        %1020 = vst [vmem:[#allocation2 + $0x10] sm:$0xff] %v1012
        %1021 = vst [vmem:[#allocation2 + $0x18] sm:$0xff] %v1013
        %1022 = vst [vmem:[#allocation2 + $0x20] sm:$0xff] %v1014
        %1023 = vst [vmem:[#allocation2 + $0x28] sm:$0xff] %v1015
        %1024 = vst [vmem:[#allocation2 + $0x30] sm:$0xff] %v1016
        %1025 = vst [vmem:[#allocation2 + $0x38] sm:$0xff] %v1017
        %v1026 = vld [vmem:[%s875] sm:$0xf]
        %v1027 = vld [vmem:[%s875 + $0x4] sm:$0x1]
        %v1028 = vld [vmem:[%s875 + $0x8] sm:$0xf]
        %v1029 = vld [vmem:[%s875 + $0xc] sm:$0x1]
        %v1030 = vld [vmem:[%s875 + $0x10] sm:$0xf]
        %v1031 = vld [vmem:[%s875 + $0x14] sm:$0x1]
        %v1032 = vld [vmem:[%s875 + $0x18] sm:$0xf]
        %v1033 = vld [vmem:[%s875 + $0x1c] sm:$0x1]
        %v1034 = vld [vmem:[%s875 + $0x20] sm:$0xf]
        %v1035 = vld [vmem:[%s875 + $0x24] sm:$0x1]
        %v1036 = vld [vmem:[%s875 + $0x28] sm:$0xf]
        %v1037 = vld [vmem:[%s875 + $0x2c] sm:$0x1]
        %v1038 = vld [vmem:[%s875 + $0x30] sm:$0xf]
        %v1039 = vld [vmem:[%s875 + $0x34] sm:$0x1]
        %v1040 = vld [vmem:[%s875 + $0x38] sm:$0xf]
        %v1041 = vld [vmem:[%s875 + $0x3c] sm:$0x1]
        %v1043 = vshrl.u32 %v1026, 16
        %v1045 = vrot.slane %v1043, 4
        %v1046 = vshll.u32 %v1026, 16
        %v1048 = vrot.slane %v1046, 5
        %v1049 = vor.u32 %v1045, %v1048
        %v1050 = vrot.slane %v1049, 4
        %v1052 = vshll.u32 %v1027, 16
        %v1054 = vrot.slane %v1052, 5
        %v1055 = vsel %vm426, %v1050, %v1054
        %v1057 = vshrl.u32 %v1028, 16
        %v1059 = vrot.slane %v1057, 4
        %v1060 = vshll.u32 %v1028, 16
        %v1062 = vrot.slane %v1060, 5
        %v1063 = vor.u32 %v1059, %v1062
        %v1064 = vrot.slane %v1063, 4
        %v1066 = vshll.u32 %v1029, 16
        %v1068 = vrot.slane %v1066, 5
        %v1069 = vsel %vm426, %v1064, %v1068
        %v1071 = vshrl.u32 %v1030, 16
        %v1073 = vrot.slane %v1071, 4
        %v1074 = vshll.u32 %v1030, 16
        %v1076 = vrot.slane %v1074, 5
        %v1077 = vor.u32 %v1073, %v1076
        %v1078 = vrot.slane %v1077, 4
        %v1080 = vshll.u32 %v1031, 16
        %v1082 = vrot.slane %v1080, 5
        %v1083 = vsel %vm426, %v1078, %v1082
        %v1085 = vshrl.u32 %v1032, 16
        %v1087 = vrot.slane %v1085, 4
        %v1088 = vshll.u32 %v1032, 16
        %v1090 = vrot.slane %v1088, 5
        %v1091 = vor.u32 %v1087, %v1090
        %v1092 = vrot.slane %v1091, 4
        %v1094 = vshll.u32 %v1033, 16
        %v1096 = vrot.slane %v1094, 5
        %v1097 = vsel %vm426, %v1092, %v1096
        %v1099 = vshrl.u32 %v1034, 16
        %v1101 = vrot.slane %v1099, 4
        %v1102 = vshll.u32 %v1034, 16
        %v1104 = vrot.slane %v1102, 5
        %v1105 = vor.u32 %v1101, %v1104
        %v1106 = vrot.slane %v1105, 4
        %v1108 = vshll.u32 %v1035, 16
        %v1110 = vrot.slane %v1108, 5
        %v1111 = vsel %vm426, %v1106, %v1110
        %v1113 = vshrl.u32 %v1036, 16
        %v1115 = vrot.slane %v1113, 4
        %v1116 = vshll.u32 %v1036, 16
        %v1118 = vrot.slane %v1116, 5
        %v1119 = vor.u32 %v1115, %v1118
        %v1120 = vrot.slane %v1119, 4
        %v1122 = vshll.u32 %v1037, 16
        %v1124 = vrot.slane %v1122, 5
        %v1125 = vsel %vm426, %v1120, %v1124
        %v1127 = vshrl.u32 %v1038, 16
        %v1129 = vrot.slane %v1127, 4
        %v1130 = vshll.u32 %v1038, 16
        %v1132 = vrot.slane %v1130, 5
        %v1133 = vor.u32 %v1129, %v1132
        %v1134 = vrot.slane %v1133, 4
        %v1136 = vshll.u32 %v1039, 16
        %v1138 = vrot.slane %v1136, 5
        %v1139 = vsel %vm426, %v1134, %v1138
        %v1141 = vshrl.u32 %v1040, 16
        %v1143 = vrot.slane %v1141, 4
        %v1144 = vshll.u32 %v1040, 16
        %v1146 = vrot.slane %v1144, 5
        %v1147 = vor.u32 %v1143, %v1146
        %v1148 = vrot.slane %v1147, 4
        %v1150 = vshll.u32 %v1041, 16
        %v1152 = vrot.slane %v1150, 5
        %v1153 = vsel %vm426, %v1148, %v1152
        %v1154 = vld [vmem:[%s884 + $0x40] sm:$0xf]
        %v1155 = vld [vmem:[%s884 + $0x44] sm:$0xf]
        %v1156 = vld [vmem:[%s884 + $0x48] sm:$0xf]
        %v1157 = vld [vmem:[%s884 + $0x4c] sm:$0xf]
        %v1158 = vld [vmem:[%s884 + $0x50] sm:$0xf]
        %v1159 = vld [vmem:[%s884 + $0x54] sm:$0xf]
        %v1160 = vld [vmem:[%s884 + $0x58] sm:$0xf]
        %v1161 = vld [vmem:[%s884 + $0x5c] sm:$0xf]
        %v1162 = vld [vmem:[%s884 + $0x60] sm:$0xf]
        %v1163 = vld [vmem:[%s884 + $0x64] sm:$0xf]
        %v1164 = vld [vmem:[%s884 + $0x68] sm:$0xf]
        %v1165 = vld [vmem:[%s884 + $0x6c] sm:$0xf]
        %v1166 = vld [vmem:[%s884 + $0x70] sm:$0xf]
        %v1167 = vld [vmem:[%s884 + $0x74] sm:$0xf]
        %v1168 = vld [vmem:[%s884 + $0x78] sm:$0xf]
        %v1169 = vld [vmem:[%s884 + $0x7c] sm:$0xf]
        %v1170 = vunpack.c.l.b16 %v1055
        %v1171 = vunpack.c.l.b16 %v1069
        %v1172 = vunpack.c.l.b16 %v1083
        %v1173 = vunpack.c.l.b16 %v1097
        %v1174 = vunpack.c.l.b16 %v1111
        %v1175 = vunpack.c.l.b16 %v1125
        %v1176 = vunpack.c.l.b16 %v1139
        %v1177 = vunpack.c.l.b16 %v1153
        %v1178 = vpack.c.b16 %v1171, %v1170
        %v1179 = vpack.c.b16 %v1173, %v1172
        %v1180 = vpack.c.b16 %v1175, %v1174
        %v1181 = vpack.c.b16 %v1177, %v1176
        %v1202 = vunpack.c.l.b16 %v1154
        %v1203 = vunpack.c.l.b16 %v1155
        %v1204 = vunpack.c.l.b16 %v1156
        %v1205 = vunpack.c.l.b16 %v1157
        %v1206 = vunpack.c.l.b16 %v1158
        %v1207 = vunpack.c.l.b16 %v1159
        %v1208 = vunpack.c.l.b16 %v1160
        %v1209 = vunpack.c.l.b16 %v1161
        %v1210 = vunpack.c.l.b16 %v1162
        %v1211 = vunpack.c.l.b16 %v1163
        %v1212 = vunpack.c.l.b16 %v1164
        %v1213 = vunpack.c.l.b16 %v1165
        %v1214 = vunpack.c.l.b16 %v1166
        %v1215 = vunpack.c.l.b16 %v1167
        %v1216 = vunpack.c.l.b16 %v1168
        %v1217 = vunpack.c.l.b16 %v1169
        %v1218 = vpack.c.b16 %v1203, %v1202
        %v1219 = vpack.c.b16 %v1205, %v1204
        %v1220 = vpack.c.b16 %v1207, %v1206
        %v1221 = vpack.c.b16 %v1209, %v1208
        %v1222 = vpack.c.b16 %v1211, %v1210
        %v1223 = vpack.c.b16 %v1213, %v1212
        %v1224 = vpack.c.b16 %v1215, %v1214
        %v1225 = vpack.c.b16 %v1217, %v1216
        %1234 = vmatpush.bf16.msra.mxu0 %v1225
        %1235 = vmatpush.bf16.msra.mxu0 %v1224
        %1236 = vmatpush.bf16.msra.mxu0 %v1223
        %1237 = vmatpush.bf16.msra.mxu0 %v1222
        %1238 = vmatpush.bf16.msra.mxu0 %v1221
        %1239 = vmatpush.bf16.msra.mxu0 %v1220
        %1240 = vmatpush.bf16.msra.mxu0 %v1219
        %1241 = vmatpush.bf16.msra.mxu0 %v1218
        %1242 = vmatmul.bf16.gmra.mxu0 %v1178
        %v1243 = vpop.f32.mrf.mxu0
        %v1244 = vadd.f32 0.0, %v1243
        %v1245 = vpop.f32.mrf.mxu0
        %v1246 = vadd.f32 0.0, %v1245
        %1247 = vmatmul.bf16.gmra.mxu0 %v1179
        %v1248 = vpop.f32.mrf.mxu0
        %v1249 = vadd.f32 0.0, %v1248
        %v1250 = vpop.f32.mrf.mxu0
        %v1251 = vadd.f32 0.0, %v1250
        %1252 = vmatmul.bf16.gmra.mxu0 %v1180
        %v1253 = vpop.f32.mrf.mxu0
        %v1254 = vadd.f32 0.0, %v1253
        %v1255 = vpop.f32.mrf.mxu0
        %v1256 = vadd.f32 0.0, %v1255
        %1257 = vmatmul.bf16.gmra.mxu0 %v1181
        %v1258 = vpop.f32.mrf.mxu0
        %v1259 = vadd.f32 0.0, %v1258
        %v1260 = vpop.f32.mrf.mxu0
        %v1261 = vadd.f32 0.0, %v1260
        %1262 = vdwg.mxu0
        %v1263 = vld [vmem:[#allocation2] sm:$0xff]
        %v1264 = vld [vmem:[#allocation2 + $0x8] sm:$0xff]
        %v1265 = vld [vmem:[#allocation2 + $0x10] sm:$0xff]
        %v1266 = vld [vmem:[#allocation2 + $0x18] sm:$0xff]
        %v1267 = vld [vmem:[#allocation2 + $0x20] sm:$0xff]
        %v1268 = vld [vmem:[#allocation2 + $0x28] sm:$0xff]
        %v1269 = vld [vmem:[#allocation2 + $0x30] sm:$0xff]
        %v1270 = vld [vmem:[#allocation2 + $0x38] sm:$0xff]
        %v1271 = vadd.f32 %v1263, %v1244
        %v1272 = vadd.f32 %v1264, %v1246
        %v1273 = vadd.f32 %v1265, %v1249
        %v1274 = vadd.f32 %v1266, %v1251
        %v1275 = vadd.f32 %v1267, %v1254
        %v1276 = vadd.f32 %v1268, %v1256
        %v1277 = vadd.f32 %v1269, %v1259
        %v1278 = vadd.f32 %v1270, %v1261
        %1279 = vst [vmem:[#allocation2] sm:$0xff] %v1271
        %1280 = vst [vmem:[#allocation2 + $0x8] sm:$0xff] %v1272
        %1281 = vst [vmem:[#allocation2 + $0x10] sm:$0xff] %v1273
        %1282 = vst [vmem:[#allocation2 + $0x18] sm:$0xff] %v1274
        %1283 = vst [vmem:[#allocation2 + $0x20] sm:$0xff] %v1275
        %1284 = vst [vmem:[#allocation2 + $0x28] sm:$0xff] %v1276
        %1285 = vst [vmem:[#allocation2 + $0x30] sm:$0xff] %v1277
        %1286 = vst [vmem:[#allocation2 + $0x38] sm:$0xff] %v1278
        %v1287 = vld [vmem:[%s875] sm:$0xe]
        %v1288 = vld [vmem:[%s875 + $0x4] sm:$0x1]
        %v1289 = vld [vmem:[%s875 + $0x8] sm:$0xe]
        %v1290 = vld [vmem:[%s875 + $0xc] sm:$0x1]
        %v1291 = vld [vmem:[%s875 + $0x10] sm:$0xe]
        %v1292 = vld [vmem:[%s875 + $0x14] sm:$0x1]
        %v1293 = vld [vmem:[%s875 + $0x18] sm:$0xe]
        %v1294 = vld [vmem:[%s875 + $0x1c] sm:$0x1]
        %v1295 = vld [vmem:[%s875 + $0x20] sm:$0xe]
        %v1296 = vld [vmem:[%s875 + $0x24] sm:$0x1]
        %v1297 = vld [vmem:[%s875 + $0x28] sm:$0xe]
        %v1298 = vld [vmem:[%s875 + $0x2c] sm:$0x1]
        %v1299 = vld [vmem:[%s875 + $0x30] sm:$0xe]
        %v1300 = vld [vmem:[%s875 + $0x34] sm:$0x1]
        %v1301 = vld [vmem:[%s875 + $0x38] sm:$0xe]
        %v1302 = vld [vmem:[%s875 + $0x3c] sm:$0x1]
        %v1319 = vrot.slane %v1287, 5
        %v1320 = vrot.slane %v1319, 4
        %v1321 = vrot.slane %v1288, 5
        %v1322 = vsel %vm706, %v1320, %v1321
        %v1323 = vrot.slane %v1289, 5
        %v1324 = vrot.slane %v1323, 4
        %v1325 = vrot.slane %v1290, 5
        %v1326 = vsel %vm706, %v1324, %v1325
        %v1327 = vrot.slane %v1291, 5
        %v1328 = vrot.slane %v1327, 4
        %v1329 = vrot.slane %v1292, 5
        %v1330 = vsel %vm706, %v1328, %v1329
        %v1331 = vrot.slane %v1293, 5
        %v1332 = vrot.slane %v1331, 4
        %v1333 = vrot.slane %v1294, 5
        %v1334 = vsel %vm706, %v1332, %v1333
        %v1335 = vrot.slane %v1295, 5
        %v1336 = vrot.slane %v1335, 4
        %v1337 = vrot.slane %v1296, 5
        %v1338 = vsel %vm706, %v1336, %v1337
        %v1339 = vrot.slane %v1297, 5
        %v1340 = vrot.slane %v1339, 4
        %v1341 = vrot.slane %v1298, 5
        %v1342 = vsel %vm706, %v1340, %v1341
        %v1343 = vrot.slane %v1299, 5
        %v1344 = vrot.slane %v1343, 4
        %v1345 = vrot.slane %v1300, 5
        %v1346 = vsel %vm706, %v1344, %v1345
        %v1347 = vrot.slane %v1301, 5
        %v1348 = vrot.slane %v1347, 4
        %v1349 = vrot.slane %v1302, 5
        %v1350 = vsel %vm706, %v1348, %v1349
        %v1351 = vld [vmem:[%s884 + $0x80] sm:$0xf]
        %v1352 = vld [vmem:[%s884 + $0x84] sm:$0xf]
        %v1353 = vld [vmem:[%s884 + $0x88] sm:$0xf]
        %v1354 = vld [vmem:[%s884 + $0x8c] sm:$0xf]
        %v1355 = vld [vmem:[%s884 + $0x90] sm:$0xf]
        %v1356 = vld [vmem:[%s884 + $0x94] sm:$0xf]
        %v1357 = vld [vmem:[%s884 + $0x98] sm:$0xf]
        %v1358 = vld [vmem:[%s884 + $0x9c] sm:$0xf]
        %v1359 = vld [vmem:[%s884 + $0xa0] sm:$0xf]
        %v1360 = vld [vmem:[%s884 + $0xa4] sm:$0xf]
        %v1361 = vld [vmem:[%s884 + $0xa8] sm:$0xf]
        %v1362 = vld [vmem:[%s884 + $0xac] sm:$0xf]
        %v1363 = vld [vmem:[%s884 + $0xb0] sm:$0xf]
        %v1364 = vld [vmem:[%s884 + $0xb4] sm:$0xf]
        %v1365 = vld [vmem:[%s884 + $0xb8] sm:$0xf]
        %v1366 = vld [vmem:[%s884 + $0xbc] sm:$0xf]
        %v1367 = vunpack.c.l.b16 %v1322
        %v1368 = vunpack.c.l.b16 %v1326
        %v1369 = vunpack.c.l.b16 %v1330
        %v1370 = vunpack.c.l.b16 %v1334
        %v1371 = vunpack.c.l.b16 %v1338
        %v1372 = vunpack.c.l.b16 %v1342
        %v1373 = vunpack.c.l.b16 %v1346
        %v1374 = vunpack.c.l.b16 %v1350
        %v1375 = vpack.c.b16 %v1368, %v1367
        %v1376 = vpack.c.b16 %v1370, %v1369
        %v1377 = vpack.c.b16 %v1372, %v1371
        %v1378 = vpack.c.b16 %v1374, %v1373
        %v1399 = vunpack.c.l.b16 %v1351
        %v1400 = vunpack.c.l.b16 %v1352
        %v1401 = vunpack.c.l.b16 %v1353
        %v1402 = vunpack.c.l.b16 %v1354
        %v1403 = vunpack.c.l.b16 %v1355
        %v1404 = vunpack.c.l.b16 %v1356
        %v1405 = vunpack.c.l.b16 %v1357
        %v1406 = vunpack.c.l.b16 %v1358
        %v1407 = vunpack.c.l.b16 %v1359
        %v1408 = vunpack.c.l.b16 %v1360
        %v1409 = vunpack.c.l.b16 %v1361
        %v1410 = vunpack.c.l.b16 %v1362
        %v1411 = vunpack.c.l.b16 %v1363
        %v1412 = vunpack.c.l.b16 %v1364
        %v1413 = vunpack.c.l.b16 %v1365
        %v1414 = vunpack.c.l.b16 %v1366
        %v1415 = vpack.c.b16 %v1400, %v1399
        %v1416 = vpack.c.b16 %v1402, %v1401
        %v1417 = vpack.c.b16 %v1404, %v1403
        %v1418 = vpack.c.b16 %v1406, %v1405
        %v1419 = vpack.c.b16 %v1408, %v1407
        %v1420 = vpack.c.b16 %v1410, %v1409
        %v1421 = vpack.c.b16 %v1412, %v1411
        %v1422 = vpack.c.b16 %v1414, %v1413
        %1431 = vmatpush.bf16.msra.mxu0 %v1422
        %1432 = vmatpush.bf16.msra.mxu0 %v1421
        %1433 = vmatpush.bf16.msra.mxu0 %v1420
        %1434 = vmatpush.bf16.msra.mxu0 %v1419
        %1435 = vmatpush.bf16.msra.mxu0 %v1418
        %1436 = vmatpush.bf16.msra.mxu0 %v1417
        %1437 = vmatpush.bf16.msra.mxu0 %v1416
        %1438 = vmatpush.bf16.msra.mxu0 %v1415
        %1439 = vmatmul.bf16.gmra.mxu0 %v1375
        %v1440 = vpop.f32.mrf.mxu0
        %v1441 = vadd.f32 0.0, %v1440
        %v1442 = vpop.f32.mrf.mxu0
        %v1443 = vadd.f32 0.0, %v1442
        %1444 = vmatmul.bf16.gmra.mxu0 %v1376
        %v1445 = vpop.f32.mrf.mxu0
        %v1446 = vadd.f32 0.0, %v1445
        %v1447 = vpop.f32.mrf.mxu0
        %v1448 = vadd.f32 0.0, %v1447
        %1449 = vmatmul.bf16.gmra.mxu0 %v1377
        %v1450 = vpop.f32.mrf.mxu0
        %v1451 = vadd.f32 0.0, %v1450
        %v1452 = vpop.f32.mrf.mxu0
        %v1453 = vadd.f32 0.0, %v1452
        %1454 = vmatmul.bf16.gmra.mxu0 %v1378
        %v1455 = vpop.f32.mrf.mxu0
        %v1456 = vadd.f32 0.0, %v1455
        %v1457 = vpop.f32.mrf.mxu0
        %v1458 = vadd.f32 0.0, %v1457
        %1459 = vdwg.mxu0
        %v1460 = vld [vmem:[#allocation2] sm:$0xff]
        %v1461 = vld [vmem:[#allocation2 + $0x8] sm:$0xff]
        %v1462 = vld [vmem:[#allocation2 + $0x10] sm:$0xff]
        %v1463 = vld [vmem:[#allocation2 + $0x18] sm:$0xff]
        %v1464 = vld [vmem:[#allocation2 + $0x20] sm:$0xff]
        %v1465 = vld [vmem:[#allocation2 + $0x28] sm:$0xff]
        %v1466 = vld [vmem:[#allocation2 + $0x30] sm:$0xff]
        %v1467 = vld [vmem:[#allocation2 + $0x38] sm:$0xff]
        %v1468 = vadd.f32 %v1460, %v1441
        %v1469 = vadd.f32 %v1461, %v1443
        %v1470 = vadd.f32 %v1462, %v1446
        %v1471 = vadd.f32 %v1463, %v1448
        %v1472 = vadd.f32 %v1464, %v1451
        %v1473 = vadd.f32 %v1465, %v1453
        %v1474 = vadd.f32 %v1466, %v1456
        %v1475 = vadd.f32 %v1467, %v1458
        %1476 = vst [vmem:[#allocation2] sm:$0xff] %v1468
        %1477 = vst [vmem:[#allocation2 + $0x8] sm:$0xff] %v1469
        %1478 = vst [vmem:[#allocation2 + $0x10] sm:$0xff] %v1470
        %1479 = vst [vmem:[#allocation2 + $0x18] sm:$0xff] %v1471
        %1480 = vst [vmem:[#allocation2 + $0x20] sm:$0xff] %v1472
        %1481 = vst [vmem:[#allocation2 + $0x28] sm:$0xff] %v1473
        %1482 = vst [vmem:[#allocation2 + $0x30] sm:$0xff] %v1474
        %1483 = vst [vmem:[#allocation2 + $0x38] sm:$0xff] %v1475
        %s1484 = sadd.s32 %s271, 2
        %s1485 = smul.u32 %s1484, 2
        %s1486 = smul.addr %s1485, 4
        %s1487 = scalar_lea.vmem [#allocation3], %s1486
        %v1488 = vld [vmem:[%s1487] sm:$0xf]
        %v1489 = vld [vmem:[%s1487 + $0x8] sm:$0xf]
        %v1490 = vld [vmem:[%s1487 + $0x10] sm:$0xf]
        %v1491 = vld [vmem:[%s1487 + $0x18] sm:$0xf]
        %v1492 = vld [vmem:[%s1487 + $0x20] sm:$0xf]
        %v1493 = vld [vmem:[%s1487 + $0x28] sm:$0xf]
        %v1494 = vld [vmem:[%s1487 + $0x30] sm:$0xf]
        %v1495 = vld [vmem:[%s1487 + $0x38] sm:$0xf]
        %s1496 = scalar_lea.vmem %s233, 384 [#allocation6]
        %v1497 = vld [vmem:[%s1496] sm:$0xf]
        %v1498 = vld [vmem:[%s1496 + $0x4] sm:$0xf]
        %v1499 = vld [vmem:[%s1496 + $0x8] sm:$0xf]
        %v1500 = vld [vmem:[%s1496 + $0xc] sm:$0xf]
        %v1501 = vld [vmem:[%s1496 + $0x10] sm:$0xf]
        %v1502 = vld [vmem:[%s1496 + $0x14] sm:$0xf]
        %v1503 = vld [vmem:[%s1496 + $0x18] sm:$0xf]
        %v1504 = vld [vmem:[%s1496 + $0x1c] sm:$0xf]
        %v1505 = vld [vmem:[%s1496 + $0x20] sm:$0xf]
        %v1506 = vld [vmem:[%s1496 + $0x24] sm:$0xf]
        %v1507 = vld [vmem:[%s1496 + $0x28] sm:$0xf]
        %v1508 = vld [vmem:[%s1496 + $0x2c] sm:$0xf]
        %v1509 = vld [vmem:[%s1496 + $0x30] sm:$0xf]
        %v1510 = vld [vmem:[%s1496 + $0x34] sm:$0xf]
        %v1511 = vld [vmem:[%s1496 + $0x38] sm:$0xf]
        %v1512 = vld [vmem:[%s1496 + $0x3c] sm:$0xf]
        %v1521 = vunpack.c.l.b16 %v1488
        %v1522 = vunpack.c.l.b16 %v1489
        %v1523 = vunpack.c.l.b16 %v1490
        %v1524 = vunpack.c.l.b16 %v1491
        %v1525 = vunpack.c.l.b16 %v1492
        %v1526 = vunpack.c.l.b16 %v1493
        %v1527 = vunpack.c.l.b16 %v1494
        %v1528 = vunpack.c.l.b16 %v1495
        %v1529 = vpack.c.b16 %v1522, %v1521
        %v1530 = vpack.c.b16 %v1524, %v1523
        %v1531 = vpack.c.b16 %v1526, %v1525
        %v1532 = vpack.c.b16 %v1528, %v1527
        %v1553 = vunpack.c.l.b16 %v1497
        %v1554 = vunpack.c.l.b16 %v1498
        %v1555 = vunpack.c.l.b16 %v1499
        %v1556 = vunpack.c.l.b16 %v1500
        %v1557 = vunpack.c.l.b16 %v1501
        %v1558 = vunpack.c.l.b16 %v1502
        %v1559 = vunpack.c.l.b16 %v1503
        %v1560 = vunpack.c.l.b16 %v1504
        %v1561 = vunpack.c.l.b16 %v1505
        %v1562 = vunpack.c.l.b16 %v1506
        %v1563 = vunpack.c.l.b16 %v1507
        %v1564 = vunpack.c.l.b16 %v1508
        %v1565 = vunpack.c.l.b16 %v1509
        %v1566 = vunpack.c.l.b16 %v1510
        %v1567 = vunpack.c.l.b16 %v1511
        %v1568 = vunpack.c.l.b16 %v1512
        %v1569 = vpack.c.b16 %v1554, %v1553
        %v1570 = vpack.c.b16 %v1556, %v1555
        %v1571 = vpack.c.b16 %v1558, %v1557
        %v1572 = vpack.c.b16 %v1560, %v1559
        %v1573 = vpack.c.b16 %v1562, %v1561
        %v1574 = vpack.c.b16 %v1564, %v1563
        %v1575 = vpack.c.b16 %v1566, %v1565
        %v1576 = vpack.c.b16 %v1568, %v1567
        %1585 = vmatpush.bf16.msra.mxu0 %v1576
        %1586 = vmatpush.bf16.msra.mxu0 %v1575
        %1587 = vmatpush.bf16.msra.mxu0 %v1574
        %1588 = vmatpush.bf16.msra.mxu0 %v1573
        %1589 = vmatpush.bf16.msra.mxu0 %v1572
        %1590 = vmatpush.bf16.msra.mxu0 %v1571
        %1591 = vmatpush.bf16.msra.mxu0 %v1570
        %1592 = vmatpush.bf16.msra.mxu0 %v1569
        %1593 = vmatmul.bf16.gmra.mxu0 %v1529
        %v1594 = vpop.f32.mrf.mxu0
        %v1595 = vadd.f32 0.0, %v1594
        %v1596 = vpop.f32.mrf.mxu0
        %v1597 = vadd.f32 0.0, %v1596
        %1598 = vmatmul.bf16.gmra.mxu0 %v1530
        %v1599 = vpop.f32.mrf.mxu0
        %v1600 = vadd.f32 0.0, %v1599
        %v1601 = vpop.f32.mrf.mxu0
        %v1602 = vadd.f32 0.0, %v1601
        %1603 = vmatmul.bf16.gmra.mxu0 %v1531
        %v1604 = vpop.f32.mrf.mxu0
        %v1605 = vadd.f32 0.0, %v1604
        %v1606 = vpop.f32.mrf.mxu0
        %v1607 = vadd.f32 0.0, %v1606
        %1608 = vmatmul.bf16.gmra.mxu0 %v1532
        %v1609 = vpop.f32.mrf.mxu0
        %v1610 = vadd.f32 0.0, %v1609
        %v1611 = vpop.f32.mrf.mxu0
        %v1612 = vadd.f32 0.0, %v1611
        %1613 = vdwg.mxu0
        %v1614 = vld [vmem:[#allocation2] sm:$0xff]
        %v1615 = vld [vmem:[#allocation2 + $0x8] sm:$0xff]
        %v1616 = vld [vmem:[#allocation2 + $0x10] sm:$0xff]
        %v1617 = vld [vmem:[#allocation2 + $0x18] sm:$0xff]
        %v1618 = vld [vmem:[#allocation2 + $0x20] sm:$0xff]
        %v1619 = vld [vmem:[#allocation2 + $0x28] sm:$0xff]
        %v1620 = vld [vmem:[#allocation2 + $0x30] sm:$0xff]
        %v1621 = vld [vmem:[#allocation2 + $0x38] sm:$0xff]
        %v1622 = vadd.f32 %v1614, %v1595
        %v1623 = vadd.f32 %v1615, %v1597
        %v1624 = vadd.f32 %v1616, %v1600
        %v1625 = vadd.f32 %v1617, %v1602
        %v1626 = vadd.f32 %v1618, %v1605
        %v1627 = vadd.f32 %v1619, %v1607
        %v1628 = vadd.f32 %v1620, %v1610
        %v1629 = vadd.f32 %v1621, %v1612
        %1630 = vst [vmem:[#allocation2] sm:$0xff] %v1622
        %1631 = vst [vmem:[#allocation2 + $0x8] sm:$0xff] %v1623
        %1632 = vst [vmem:[#allocation2 + $0x10] sm:$0xff] %v1624
        %1633 = vst [vmem:[#allocation2 + $0x18] sm:$0xff] %v1625
        %1634 = vst [vmem:[#allocation2 + $0x20] sm:$0xff] %v1626
        %1635 = vst [vmem:[#allocation2 + $0x28] sm:$0xff] %v1627
        %1636 = vst [vmem:[#allocation2 + $0x30] sm:$0xff] %v1628
        %1637 = vst [vmem:[#allocation2 + $0x38] sm:$0xff] %v1629
        %v1638 = vld [vmem:[%s1487] sm:$0xf]
        %v1639 = vld [vmem:[%s1487 + $0x4] sm:$0x1]
        %v1640 = vld [vmem:[%s1487 + $0x8] sm:$0xf]
        %v1641 = vld [vmem:[%s1487 + $0xc] sm:$0x1]
        %v1642 = vld [vmem:[%s1487 + $0x10] sm:$0xf]
        %v1643 = vld [vmem:[%s1487 + $0x14] sm:$0x1]
        %v1644 = vld [vmem:[%s1487 + $0x18] sm:$0xf]
        %v1645 = vld [vmem:[%s1487 + $0x1c] sm:$0x1]
        %v1646 = vld [vmem:[%s1487 + $0x20] sm:$0xf]
        %v1647 = vld [vmem:[%s1487 + $0x24] sm:$0x1]
        %v1648 = vld [vmem:[%s1487 + $0x28] sm:$0xf]
        %v1649 = vld [vmem:[%s1487 + $0x2c] sm:$0x1]
        %v1650 = vld [vmem:[%s1487 + $0x30] sm:$0xf]
        %v1651 = vld [vmem:[%s1487 + $0x34] sm:$0x1]
        %v1652 = vld [vmem:[%s1487 + $0x38] sm:$0xf]
        %v1653 = vld [vmem:[%s1487 + $0x3c] sm:$0x1]
        %v1655 = vshrl.u32 %v1638, 16
        %v1657 = vrot.slane %v1655, 4
        %v1658 = vshll.u32 %v1638, 16
        %v1660 = vrot.slane %v1658, 5
        %v1661 = vor.u32 %v1657, %v1660
        %v1662 = vrot.slane %v1661, 4
        %v1664 = vshll.u32 %v1639, 16
        %v1666 = vrot.slane %v1664, 5
        %v1667 = vsel %vm426, %v1662, %v1666
        %v1669 = vshrl.u32 %v1640, 16
        %v1671 = vrot.slane %v1669, 4
        %v1672 = vshll.u32 %v1640, 16
        %v1674 = vrot.slane %v1672, 5
        %v1675 = vor.u32 %v1671, %v1674
        %v1676 = vrot.slane %v1675, 4
        %v1678 = vshll.u32 %v1641, 16
        %v1680 = vrot.slane %v1678, 5
        %v1681 = vsel %vm426, %v1676, %v1680
        %v1683 = vshrl.u32 %v1642, 16
        %v1685 = vrot.slane %v1683, 4
        %v1686 = vshll.u32 %v1642, 16
        %v1688 = vrot.slane %v1686, 5
        %v1689 = vor.u32 %v1685, %v1688
        %v1690 = vrot.slane %v1689, 4
        %v1692 = vshll.u32 %v1643, 16
        %v1694 = vrot.slane %v1692, 5
        %v1695 = vsel %vm426, %v1690, %v1694
        %v1697 = vshrl.u32 %v1644, 16
        %v1699 = vrot.slane %v1697, 4
        %v1700 = vshll.u32 %v1644, 16
        %v1702 = vrot.slane %v1700, 5
        %v1703 = vor.u32 %v1699, %v1702
        %v1704 = vrot.slane %v1703, 4
        %v1706 = vshll.u32 %v1645, 16
        %v1708 = vrot.slane %v1706, 5
        %v1709 = vsel %vm426, %v1704, %v1708
        %v1711 = vshrl.u32 %v1646, 16
        %v1713 = vrot.slane %v1711, 4
        %v1714 = vshll.u32 %v1646, 16
        %v1716 = vrot.slane %v1714, 5
        %v1717 = vor.u32 %v1713, %v1716
        %v1718 = vrot.slane %v1717, 4
        %v1720 = vshll.u32 %v1647, 16
        %v1722 = vrot.slane %v1720, 5
        %v1723 = vsel %vm426, %v1718, %v1722
        %v1725 = vshrl.u32 %v1648, 16
        %v1727 = vrot.slane %v1725, 4
        %v1728 = vshll.u32 %v1648, 16
        %v1730 = vrot.slane %v1728, 5
        %v1731 = vor.u32 %v1727, %v1730
        %v1732 = vrot.slane %v1731, 4
        %v1734 = vshll.u32 %v1649, 16
        %v1736 = vrot.slane %v1734, 5
        %v1737 = vsel %vm426, %v1732, %v1736
        %v1739 = vshrl.u32 %v1650, 16
        %v1741 = vrot.slane %v1739, 4
        %v1742 = vshll.u32 %v1650, 16
        %v1744 = vrot.slane %v1742, 5
        %v1745 = vor.u32 %v1741, %v1744
        %v1746 = vrot.slane %v1745, 4
        %v1748 = vshll.u32 %v1651, 16
        %v1750 = vrot.slane %v1748, 5
        %v1751 = vsel %vm426, %v1746, %v1750
        %v1753 = vshrl.u32 %v1652, 16
        %v1755 = vrot.slane %v1753, 4
        %v1756 = vshll.u32 %v1652, 16
        %v1758 = vrot.slane %v1756, 5
        %v1759 = vor.u32 %v1755, %v1758
        %v1760 = vrot.slane %v1759, 4
        %v1762 = vshll.u32 %v1653, 16
        %v1764 = vrot.slane %v1762, 5
        %v1765 = vsel %vm426, %v1760, %v1764
        %v1766 = vld [vmem:[%s1496 + $0x40] sm:$0xf]
        %v1767 = vld [vmem:[%s1496 + $0x44] sm:$0xf]
        %v1768 = vld [vmem:[%s1496 + $0x48] sm:$0xf]
        %v1769 = vld [vmem:[%s1496 + $0x4c] sm:$0xf]
        %v1770 = vld [vmem:[%s1496 + $0x50] sm:$0xf]
        %v1771 = vld [vmem:[%s1496 + $0x54] sm:$0xf]
        %v1772 = vld [vmem:[%s1496 + $0x58] sm:$0xf]
        %v1773 = vld [vmem:[%s1496 + $0x5c] sm:$0xf]
        %v1774 = vld [vmem:[%s1496 + $0x60] sm:$0xf]
        %v1775 = vld [vmem:[%s1496 + $0x64] sm:$0xf]
        %v1776 = vld [vmem:[%s1496 + $0x68] sm:$0xf]
        %v1777 = vld [vmem:[%s1496 + $0x6c] sm:$0xf]
        %v1778 = vld [vmem:[%s1496 + $0x70] sm:$0xf]
        %v1779 = vld [vmem:[%s1496 + $0x74] sm:$0xf]
        %v1780 = vld [vmem:[%s1496 + $0x78] sm:$0xf]
        %v1781 = vld [vmem:[%s1496 + $0x7c] sm:$0xf]
        %v1782 = vunpack.c.l.b16 %v1667
        %v1783 = vunpack.c.l.b16 %v1681
        %v1784 = vunpack.c.l.b16 %v1695
        %v1785 = vunpack.c.l.b16 %v1709
        %v1786 = vunpack.c.l.b16 %v1723
        %v1787 = vunpack.c.l.b16 %v1737
        %v1788 = vunpack.c.l.b16 %v1751
        %v1789 = vunpack.c.l.b16 %v1765
        %v1790 = vpack.c.b16 %v1783, %v1782
        %v1791 = vpack.c.b16 %v1785, %v1784
        %v1792 = vpack.c.b16 %v1787, %v1786
        %v1793 = vpack.c.b16 %v1789, %v1788
        %v1814 = vunpack.c.l.b16 %v1766
        %v1815 = vunpack.c.l.b16 %v1767
        %v1816 = vunpack.c.l.b16 %v1768
        %v1817 = vunpack.c.l.b16 %v1769
        %v1818 = vunpack.c.l.b16 %v1770
        %v1819 = vunpack.c.l.b16 %v1771
        %v1820 = vunpack.c.l.b16 %v1772
        %v1821 = vunpack.c.l.b16 %v1773
        %v1822 = vunpack.c.l.b16 %v1774
        %v1823 = vunpack.c.l.b16 %v1775
        %v1824 = vunpack.c.l.b16 %v1776
        %v1825 = vunpack.c.l.b16 %v1777
        %v1826 = vunpack.c.l.b16 %v1778
        %v1827 = vunpack.c.l.b16 %v1779
        %v1828 = vunpack.c.l.b16 %v1780
        %v1829 = vunpack.c.l.b16 %v1781
        %v1830 = vpack.c.b16 %v1815, %v1814
        %v1831 = vpack.c.b16 %v1817, %v1816
        %v1832 = vpack.c.b16 %v1819, %v1818
        %v1833 = vpack.c.b16 %v1821, %v1820
        %v1834 = vpack.c.b16 %v1823, %v1822
        %v1835 = vpack.c.b16 %v1825, %v1824
        %v1836 = vpack.c.b16 %v1827, %v1826
        %v1837 = vpack.c.b16 %v1829, %v1828
        %1846 = vmatpush.bf16.msra.mxu0 %v1837
        %1847 = vmatpush.bf16.msra.mxu0 %v1836
        %1848 = vmatpush.bf16.msra.mxu0 %v1835
        %1849 = vmatpush.bf16.msra.mxu0 %v1834
        %1850 = vmatpush.bf16.msra.mxu0 %v1833
        %1851 = vmatpush.bf16.msra.mxu0 %v1832
        %1852 = vmatpush.bf16.msra.mxu0 %v1831
        %1853 = vmatpush.bf16.msra.mxu0 %v1830
        %1854 = vmatmul.bf16.gmra.mxu0 %v1790
        %v1855 = vpop.f32.mrf.mxu0
        %v1856 = vadd.f32 0.0, %v1855
        %v1857 = vpop.f32.mrf.mxu0
        %v1858 = vadd.f32 0.0, %v1857
        %1859 = vmatmul.bf16.gmra.mxu0 %v1791
        %v1860 = vpop.f32.mrf.mxu0
        %v1861 = vadd.f32 0.0, %v1860
        %v1862 = vpop.f32.mrf.mxu0
        %v1863 = vadd.f32 0.0, %v1862
        %1864 = vmatmul.bf16.gmra.mxu0 %v1792
        %v1865 = vpop.f32.mrf.mxu0
        %v1866 = vadd.f32 0.0, %v1865
        %v1867 = vpop.f32.mrf.mxu0
        %v1868 = vadd.f32 0.0, %v1867
        %1869 = vmatmul.bf16.gmra.mxu0 %v1793
        %v1870 = vpop.f32.mrf.mxu0
        %v1871 = vadd.f32 0.0, %v1870
        %v1872 = vpop.f32.mrf.mxu0
        %v1873 = vadd.f32 0.0, %v1872
        %1874 = vdwg.mxu0
        %v1875 = vld [vmem:[#allocation2] sm:$0xff]
        %v1876 = vld [vmem:[#allocation2 + $0x8] sm:$0xff]
        %v1877 = vld [vmem:[#allocation2 + $0x10] sm:$0xff]
        %v1878 = vld [vmem:[#allocation2 + $0x18] sm:$0xff]
        %v1879 = vld [vmem:[#allocation2 + $0x20] sm:$0xff]
        %v1880 = vld [vmem:[#allocation2 + $0x28] sm:$0xff]
        %v1881 = vld [vmem:[#allocation2 + $0x30] sm:$0xff]
        %v1882 = vld [vmem:[#allocation2 + $0x38] sm:$0xff]
        %v1883 = vadd.f32 %v1875, %v1856
        %v1884 = vadd.f32 %v1876, %v1858
        %v1885 = vadd.f32 %v1877, %v1861
        %v1886 = vadd.f32 %v1878, %v1863
        %v1887 = vadd.f32 %v1879, %v1866
        %v1888 = vadd.f32 %v1880, %v1868
        %v1889 = vadd.f32 %v1881, %v1871
        %v1890 = vadd.f32 %v1882, %v1873
        %1891 = vst [vmem:[#allocation2] sm:$0xff] %v1883
        %1892 = vst [vmem:[#allocation2 + $0x8] sm:$0xff] %v1884
        %1893 = vst [vmem:[#allocation2 + $0x10] sm:$0xff] %v1885
        %1894 = vst [vmem:[#allocation2 + $0x18] sm:$0xff] %v1886
        %1895 = vst [vmem:[#allocation2 + $0x20] sm:$0xff] %v1887
        %1896 = vst [vmem:[#allocation2 + $0x28] sm:$0xff] %v1888
        %1897 = vst [vmem:[#allocation2 + $0x30] sm:$0xff] %v1889
        %1898 = vst [vmem:[#allocation2 + $0x38] sm:$0xff] %v1890
        %v1899 = vld [vmem:[%s1487] sm:$0xe]
        %v1900 = vld [vmem:[%s1487 + $0x4] sm:$0x1]
        %v1901 = vld [vmem:[%s1487 + $0x8] sm:$0xe]
        %v1902 = vld [vmem:[%s1487 + $0xc] sm:$0x1]
        %v1903 = vld [vmem:[%s1487 + $0x10] sm:$0xe]
        %v1904 = vld [vmem:[%s1487 + $0x14] sm:$0x1]
        %v1905 = vld [vmem:[%s1487 + $0x18] sm:$0xe]
        %v1906 = vld [vmem:[%s1487 + $0x1c] sm:$0x1]
        %v1907 = vld [vmem:[%s1487 + $0x20] sm:$0xe]
        %v1908 = vld [vmem:[%s1487 + $0x24] sm:$0x1]
        %v1909 = vld [vmem:[%s1487 + $0x28] sm:$0xe]
        %v1910 = vld [vmem:[%s1487 + $0x2c] sm:$0x1]
        %v1911 = vld [vmem:[%s1487 + $0x30] sm:$0xe]
        %v1912 = vld [vmem:[%s1487 + $0x34] sm:$0x1]
        %v1913 = vld [vmem:[%s1487 + $0x38] sm:$0xe]
        %v1914 = vld [vmem:[%s1487 + $0x3c] sm:$0x1]
        %v1931 = vrot.slane %v1899, 5
        %v1932 = vrot.slane %v1931, 4
        %v1933 = vrot.slane %v1900, 5
        %v1934 = vsel %vm706, %v1932, %v1933
        %v1935 = vrot.slane %v1901, 5
        %v1936 = vrot.slane %v1935, 4
        %v1937 = vrot.slane %v1902, 5
        %v1938 = vsel %vm706, %v1936, %v1937
        %v1939 = vrot.slane %v1903, 5
        %v1940 = vrot.slane %v1939, 4
        %v1941 = vrot.slane %v1904, 5
        %v1942 = vsel %vm706, %v1940, %v1941
        %v1943 = vrot.slane %v1905, 5
        %v1944 = vrot.slane %v1943, 4
        %v1945 = vrot.slane %v1906, 5
        %v1946 = vsel %vm706, %v1944, %v1945
        %v1947 = vrot.slane %v1907, 5
        %v1948 = vrot.slane %v1947, 4
        %v1949 = vrot.slane %v1908, 5
        %v1950 = vsel %vm706, %v1948, %v1949
        %v1951 = vrot.slane %v1909, 5
        %v1952 = vrot.slane %v1951, 4
        %v1953 = vrot.slane %v1910, 5
        %v1954 = vsel %vm706, %v1952, %v1953
        %v1955 = vrot.slane %v1911, 5
        %v1956 = vrot.slane %v1955, 4
        %v1957 = vrot.slane %v1912, 5
        %v1958 = vsel %vm706, %v1956, %v1957
        %v1959 = vrot.slane %v1913, 5
        %v1960 = vrot.slane %v1959, 4
        %v1961 = vrot.slane %v1914, 5
        %v1962 = vsel %vm706, %v1960, %v1961
        %v1963 = vld [vmem:[%s1496 + $0x80] sm:$0xf]
        %v1964 = vld [vmem:[%s1496 + $0x84] sm:$0xf]
        %v1965 = vld [vmem:[%s1496 + $0x88] sm:$0xf]
        %v1966 = vld [vmem:[%s1496 + $0x8c] sm:$0xf]
        %v1967 = vld [vmem:[%s1496 + $0x90] sm:$0xf]
        %v1968 = vld [vmem:[%s1496 + $0x94] sm:$0xf]
        %v1969 = vld [vmem:[%s1496 + $0x98] sm:$0xf]
        %v1970 = vld [vmem:[%s1496 + $0x9c] sm:$0xf]
        %v1971 = vld [vmem:[%s1496 + $0xa0] sm:$0xf]
        %v1972 = vld [vmem:[%s1496 + $0xa4] sm:$0xf]
        %v1973 = vld [vmem:[%s1496 + $0xa8] sm:$0xf]
        %v1974 = vld [vmem:[%s1496 + $0xac] sm:$0xf]
        %v1975 = vld [vmem:[%s1496 + $0xb0] sm:$0xf]
        %v1976 = vld [vmem:[%s1496 + $0xb4] sm:$0xf]
        %v1977 = vld [vmem:[%s1496 + $0xb8] sm:$0xf]
        %v1978 = vld [vmem:[%s1496 + $0xbc] sm:$0xf]
        %v1979 = vunpack.c.l.b16 %v1934
        %v1980 = vunpack.c.l.b16 %v1938
        %v1981 = vunpack.c.l.b16 %v1942
        %v1982 = vunpack.c.l.b16 %v1946
        %v1983 = vunpack.c.l.b16 %v1950
        %v1984 = vunpack.c.l.b16 %v1954
        %v1985 = vunpack.c.l.b16 %v1958
        %v1986 = vunpack.c.l.b16 %v1962
        %v1987 = vpack.c.b16 %v1980, %v1979
        %v1988 = vpack.c.b16 %v1982, %v1981
        %v1989 = vpack.c.b16 %v1984, %v1983
        %v1990 = vpack.c.b16 %v1986, %v1985
        %v2011 = vunpack.c.l.b16 %v1963
        %v2012 = vunpack.c.l.b16 %v1964
        %v2013 = vunpack.c.l.b16 %v1965
        %v2014 = vunpack.c.l.b16 %v1966
        %v2015 = vunpack.c.l.b16 %v1967
        %v2016 = vunpack.c.l.b16 %v1968
        %v2017 = vunpack.c.l.b16 %v1969
        %v2018 = vunpack.c.l.b16 %v1970
        %v2019 = vunpack.c.l.b16 %v1971
        %v2020 = vunpack.c.l.b16 %v1972
        %v2021 = vunpack.c.l.b16 %v1973
        %v2022 = vunpack.c.l.b16 %v1974
        %v2023 = vunpack.c.l.b16 %v1975
        %v2024 = vunpack.c.l.b16 %v1976
        %v2025 = vunpack.c.l.b16 %v1977
        %v2026 = vunpack.c.l.b16 %v1978
        %v2027 = vpack.c.b16 %v2012, %v2011
        %v2028 = vpack.c.b16 %v2014, %v2013
        %v2029 = vpack.c.b16 %v2016, %v2015
        %v2030 = vpack.c.b16 %v2018, %v2017
        %v2031 = vpack.c.b16 %v2020, %v2019
        %v2032 = vpack.c.b16 %v2022, %v2021
        %v2033 = vpack.c.b16 %v2024, %v2023
        %v2034 = vpack.c.b16 %v2026, %v2025
        %2043 = vmatpush.bf16.msra.mxu0 %v2034
        %2044 = vmatpush.bf16.msra.mxu0 %v2033
        %2045 = vmatpush.bf16.msra.mxu0 %v2032
        %2046 = vmatpush.bf16.msra.mxu0 %v2031
        %2047 = vmatpush.bf16.msra.mxu0 %v2030
        %2048 = vmatpush.bf16.msra.mxu0 %v2029
        %2049 = vmatpush.bf16.msra.mxu0 %v2028
        %2050 = vmatpush.bf16.msra.mxu0 %v2027
        %2051 = vmatmul.bf16.gmra.mxu0 %v1987
        %v2052 = vpop.f32.mrf.mxu0
        %v2053 = vadd.f32 0.0, %v2052
        %v2054 = vpop.f32.mrf.mxu0
        %v2055 = vadd.f32 0.0, %v2054
        %2056 = vmatmul.bf16.gmra.mxu0 %v1988
        %v2057 = vpop.f32.mrf.mxu0
        %v2058 = vadd.f32 0.0, %v2057
        %v2059 = vpop.f32.mrf.mxu0
        %v2060 = vadd.f32 0.0, %v2059
        %2061 = vmatmul.bf16.gmra.mxu0 %v1989
        %v2062 = vpop.f32.mrf.mxu0
        %v2063 = vadd.f32 0.0, %v2062
        %v2064 = vpop.f32.mrf.mxu0
        %v2065 = vadd.f32 0.0, %v2064
        %2066 = vmatmul.bf16.gmra.mxu0 %v1990
        %v2067 = vpop.f32.mrf.mxu0
        %v2068 = vadd.f32 0.0, %v2067
        %v2069 = vpop.f32.mrf.mxu0
        %v2070 = vadd.f32 0.0, %v2069
        %2071 = vdwg.mxu0
        %v2072 = vld [vmem:[#allocation2] sm:$0xff]
        %v2073 = vld [vmem:[#allocation2 + $0x8] sm:$0xff]
        %v2074 = vld [vmem:[#allocation2 + $0x10] sm:$0xff]
        %v2075 = vld [vmem:[#allocation2 + $0x18] sm:$0xff]
        %v2076 = vld [vmem:[#allocation2 + $0x20] sm:$0xff]
        %v2077 = vld [vmem:[#allocation2 + $0x28] sm:$0xff]
        %v2078 = vld [vmem:[#allocation2 + $0x30] sm:$0xff]
        %v2079 = vld [vmem:[#allocation2 + $0x38] sm:$0xff]
        %v2080 = vadd.f32 %v2072, %v2053
        %v2081 = vadd.f32 %v2073, %v2055
        %v2082 = vadd.f32 %v2074, %v2058
        %v2083 = vadd.f32 %v2075, %v2060
        %v2084 = vadd.f32 %v2076, %v2063
        %v2085 = vadd.f32 %v2077, %v2065
        %v2086 = vadd.f32 %v2078, %v2068
        %v2087 = vadd.f32 %v2079, %v2070
        %2088 = vst [vmem:[#allocation2] sm:$0xff] %v2080
        %2089 = vst [vmem:[#allocation2 + $0x8] sm:$0xff] %v2081
        %2090 = vst [vmem:[#allocation2 + $0x10] sm:$0xff] %v2082
        %2091 = vst [vmem:[#allocation2 + $0x18] sm:$0xff] %v2083
        %2092 = vst [vmem:[#allocation2 + $0x20] sm:$0xff] %v2084
        %2093 = vst [vmem:[#allocation2 + $0x28] sm:$0xff] %v2085
        %2094 = vst [vmem:[#allocation2 + $0x30] sm:$0xff] %v2086
        %2095 = vst [vmem:[#allocation2 + $0x38] sm:$0xff] %v2087
        %v2096 = vld [vmem:[#allocation2] sm:$0xff]
        %v2097 = vld [vmem:[#allocation2 + $0x8] sm:$0xff]
        %v2098 = vld [vmem:[#allocation2 + $0x10] sm:$0xff]
        %v2099 = vld [vmem:[#allocation2 + $0x18] sm:$0xff]
        %v2100 = vld [vmem:[#allocation2 + $0x20] sm:$0xff]
        %v2101 = vld [vmem:[#allocation2 + $0x28] sm:$0xff]
        %v2102 = vld [vmem:[#allocation2 + $0x30] sm:$0xff]
        %v2103 = vld [vmem:[#allocation2 + $0x38] sm:$0xff]
        %v2104 = vld [vmem:[%s242] sm:$0x1]
        %v2106 = vperm.slane %v2104, 0
        %v2108 = vadd.f32 %v2096, %v2106
        %v2109 = vadd.f32 %v2097, %v2106
        %v2110 = vadd.f32 %v2098, %v2106
        %v2111 = vadd.f32 %v2099, %v2106
        %v2112 = vadd.f32 %v2100, %v2106
        %v2113 = vadd.f32 %v2101, %v2106
        %v2114 = vadd.f32 %v2102, %v2106
        %v2115 = vadd.f32 %v2103, %v2106
        %v2116 = vmax.f32 %v2108, 0.0
        %v2117 = vmax.f32 %v2109, 0.0
        %v2118 = vmax.f32 %v2110, 0.0
        %v2119 = vmax.f32 %v2111, 0.0
        %v2120 = vmax.f32 %v2112, 0.0
        %v2121 = vmax.f32 %v2113, 0.0
        %v2122 = vmax.f32 %v2114, 0.0
        %v2123 = vmax.f32 %v2115, 0.0
        %v2124 = vpack.c.bf16 %v2116, %v2116
        %v2125 = vpack.c.bf16 %v2117, %v2117
        %v2126 = vpack.c.bf16 %v2118, %v2118
        %v2127 = vpack.c.bf16 %v2119, %v2119
        %v2128 = vpack.c.bf16 %v2120, %v2120
        %v2129 = vpack.c.bf16 %v2121, %v2121
        %v2130 = vpack.c.bf16 %v2122, %v2122
        %v2131 = vpack.c.bf16 %v2123, %v2123
        %2132 = vst [vmem:[%s269] sm:$0xf] %v2124
        %2133 = vst [vmem:[%s269 + $0x4] sm:$0xf] %v2125
        %2134 = vst [vmem:[%s269 + $0x8] sm:$0xf] %v2126
        %2135 = vst [vmem:[%s269 + $0xc] sm:$0xf] %v2127
        %2136 = vst [vmem:[%s269 + $0x10] sm:$0xf] %v2128
        %2137 = vst [vmem:[%s269 + $0x14] sm:$0xf] %v2129
        %2138 = vst [vmem:[%s269 + $0x18] sm:$0xf] %v2130
        %2139 = vst [vmem:[%s269 + $0x1c] sm:$0xf] %v2131
        %s2140 = sand.u32 %s130, 1
        %s2141 = scalar_lea.sflag [#allocation5], %s2140
        %s2142 = sand.u32 %s130, 1
        %s2143 = smul.addr %s2142, 32
        %s2144 = scalar_lea.vmem [#allocation9], %s2143
        // Predicated region
        $region45: #{tpu_custom_call.1} parent=31 // pred_check
          %p2145 = pneg %p140
        $region46: #{tpu_custom_call.1} parent=31 // pred_check_branch
          %2147 = sbr.rel (%p2145) target = $region48
        $region47: #{tpu_custom_call.1} parent=31 // pred_region
          %s2148 = smul.u32 8, %s28
          %2150 = vsyncadd %s2141, 0
          %s2151 = smul.addr %s2148, 2
          %s2152 = sadd.s32 %s26, %s2151
          %s2153 = smul.addr %s27, 16
          %s2154 = sadd.s32 %s2152, %s2153
          %s2155 = smul.addr %s2154, 4
          %s2156 = scalar_lea.hbm %s3, %s2155
          %s2157 = sshll.u32 %s2144, 4
          %s2158 = int_to_ptr.vmem [resolvable:$true] %s2157
          %s2159 = sshll.u32 %s2156, 4
          %s2160 = int_to_ptr.hbm [resolvable:$true] %s2159
          %2165 = dma.vmem_to_hbm [thread:$0]  %s2158, 512, %s2160, %s2141, 64, 128, 4
        $region48: #{tpu_custom_call.1} parent=31 // pred_fallthru
          _
      $region32: #{tpu_custom_call.1} parent=5 // pred_fallthru
        _
      %p2166 = scmp.le.s32.totalorder 2, %s16
      // Predicated region
      $region49: #{tpu_custom_call.1} parent=5 // pred_check
        %p2167 = pneg %p2166
      $region50: #{tpu_custom_call.1} parent=5 // pred_check_branch
        %2169 = sbr.rel (%p2167) target = $region52
      $region51: #{tpu_custom_call.1} parent=5 // pred_region
        %s2170 = ssub.s32 %s16, 2
        // Predicated region
        $region53: #{tpu_custom_call.1} parent=51 // pred_check
          %p2171 = pneg %p146
        $region54: #{tpu_custom_call.1} parent=51 // pred_check_branch
          %2173 = sbr.rel (%p2171) target = $region56
        $region55: #{tpu_custom_call.1} parent=51 // pred_region
          %s2174 = sand.u32 %s131, 1
          %s2175 = scalar_lea.sflag [#allocation5], %s2174
          %s2176 = sand.u32 %s131, 1
          %s2177 = smul.addr %s2176, 32
          %s2178 = scalar_lea.vmem [#allocation9], %s2177
          %2180 = dma.done %s2175, 512
        $region56: #{tpu_custom_call.1} parent=51 // pred_fallthru
          _
      $region52: #{tpu_custom_call.1} parent=5 // pred_fallthru
        _
    $region6: #{tpu_custom_call.1} parent=1 // loop_footer
      %s20 = sadd.s32 1, %s16
    $region7: #{tpu_custom_call.1} parent=1 // loop_footer_branch
      %15 = sbr.rel target = $region3
    $region8: #{tpu_custom_call.1} parent=1 // loop_exit
      _
    %2181 = vsyncpa [#allocation4], 1
    %s2182 = scalar_lea.sflag [#allocation4], 1
    %2183 = vsyncpa %s2182, 1
    %2184 = vsyncpa [#allocation7], 1
    %s2185 = scalar_lea.sflag [#allocation7], 1
    %2186 = vsyncpa %s2185, 1
    %2187 = vsyncpa [#allocation5], 1
    %s2188 = scalar_lea.sflag [#allocation5], 1
    %2189 = vsyncpa %s2188, 1

</llo_original>
